<compile_context>
chip_gen: v7x
topology: tpu7x:2x2x1
jax: 0.10.0
libtpu: 0.0.40
codegen_flags: <defaults>
</compile_context>

<pallas_src>
import functools
import math

import jax
import jax.numpy as jnp
from jax import lax
from jax.experimental import pallas as pl
from jax.experimental.pallas import tpu as pltpu

SEQ_LENGTH = 128  # matches the PyTorch module's constant


def _flash_attn_kernel(xq_ref, xkv_ref, wq_ref, bq_ref, wkv_ref, bkv_ref,
                       o_ref,
                       q_scr, m_scr, l_scr, acc_scr, k_cache, v_cache,
                       *, dims, scale, block_kv):
    # xq_ref : (1, tq, d_model)   query-side rows of x for this q tile
    # xkv_ref: (1, tk, d_model)   key/value-side rows of x for this kv tile
    # wq_ref : (d_model, dims)    Wq
    # bq_ref : (1, dims)          bq
    # wkv_ref: (d_model, 2*dims)  fused [Wk | Wv]
    # bkv_ref: (1, 2*dims)        fused [bk | bv]
    # o_ref  : (1, tq, dims)      output tile (constant across the kv axis)
    qi = pl.program_id(1)
    ki = pl.program_id(2)
    koff = pl.multiple_of(ki * block_kv, block_kv)

    # ---- per-q-tile init (first kv step of every q tile) ----
    @pl.when(ki == 0)
    def _():
        xq = xq_ref[0]                                            # (tq, d_model)
        q = jnp.dot(xq, wq_ref[...], preferred_element_type=jnp.float32)
        q_scr[...] = (q + bq_ref[0]) * scale                      # fold softmax scale into q
        m_scr[...] = jnp.full_like(m_scr, -jnp.inf)
        l_scr[...] = jnp.zeros_like(l_scr)
        acc_scr[...] = jnp.zeros_like(acc_scr)

    # ---- project k/v only on the FIRST q tile of each batch; cache in VMEM ----
    @pl.when(qi == 0)
    def _():
        xkv = xkv_ref[0]                                          # (tk, d_model)
        kv = jnp.dot(xkv, wkv_ref[...], preferred_element_type=jnp.float32)
        kv = kv + bkv_ref[0]                                      # (tk, 2*dims)
        k_cache[pl.ds(koff, block_kv), :] = kv[:, 0:dims]
        v_cache[pl.ds(koff, block_kv), :] = kv[:, dims:2 * dims]

    k = k_cache[pl.ds(koff, block_kv), :]                         # (tk, dims)
    v = v_cache[pl.ds(koff, block_kv), :]                         # (tk, dims)

    # Scores via contraction on the last dims (no explicit k.T materialized).
    s = lax.dot_general(q_scr[...], k, (((1,), (1,)), ((), ())),
                        preferred_element_type=jnp.float32)       # (tq, tk)

    # Online (flash) softmax update.
    m_prev = m_scr[...]
    m_new = jnp.maximum(m_prev, jnp.max(s, axis=-1, keepdims=True))
    alpha = jnp.exp(m_prev - m_new)
    p = jnp.exp(s - m_new)
    l_scr[...] = alpha * l_scr[...] + jnp.sum(p, axis=-1, keepdims=True)
    acc_scr[...] = alpha * acc_scr[...] + jnp.dot(
        p, v, preferred_element_type=jnp.float32)
    m_scr[...] = m_new

    @pl.when(ki == pl.num_programs(2) - 1)
    def _():
        # Final normalize: divide the small (tq, dims) accumulator, not (S, S).
        o_ref[0] = (acc_scr[...] / l_scr[...]).astype(o_ref.dtype)


def _pick_tile(s, target=256):
    """Largest power-of-two tile <= target dividing s (s itself if small)."""
    if s <= target:
        return s
    t = target
    while s % t != 0 and t > 8:
        t //= 2
    return t


def masked_attention(x, wq, wk, wv, bq, bk, bv, *, block_q=None, block_kv=None):
    """x: (B, S, d_model); w*: (d_model, dims); b*: (dims,). Returns (B, S, dims)."""
    B, S, d_model = x.shape
    dims = wq.shape[1]
    scale = dims ** (-0.5)

    # Fuse the K/V projections in the wrapper (one-time, outside the kernel).
    w_kv = jnp.concatenate([wk, wv], axis=1)                  # (d_model, 2*dims)
    b_kv = jnp.concatenate([bk, bv], axis=0)[None, :]         # (1, 2*dims)
    b_q = bq[None, :]                                         # (1, dims)

    tq = block_q or _pick_tile(S)
    tk = block_kv or _pick_tile(S)
    assert S % tq == 0 and S % tk == 0, "sequence must be divisible by tiles"

    grid = (B, S // tq, S // tk)  # kv (reduction) axis innermost

    kernel = functools.partial(_flash_attn_kernel, dims=dims, scale=scale,
                               block_kv=tk)

    out = pl.pallas_call(
        kernel,
        out_shape=jax.ShapeDtypeStruct((B, S, dims), x.dtype),
        grid_spec=pltpu.PrefetchScalarGridSpec(
            num_scalar_prefetch=0,
            grid=grid,
            in_specs=[
                # x for the q side: constant across the kv axis (no re-DMA).
                pl.BlockSpec((1, tq, d_model), lambda b, qi, ki: (b, qi, 0)),
                # x for the k/v side: walks the kv axis (only consumed at qi==0).
                pl.BlockSpec((1, tk, d_model), lambda b, qi, ki: (b, ki, 0)),
                # Weights / biases: constant blocks, fetched once.
                pl.BlockSpec((d_model, dims), lambda b, qi, ki: (0, 0)),
                pl.BlockSpec((1, dims), lambda b, qi, ki: (0, 0)),
                pl.BlockSpec((d_model, 2 * dims), lambda b, qi, ki: (0, 0)),
                pl.BlockSpec((1, 2 * dims), lambda b, qi, ki: (0, 0)),
            ],
            out_specs=pl.BlockSpec((1, tq, dims), lambda b, qi, ki: (b, qi, 0)),
            scratch_shapes=[
                pltpu.VMEM((tq, dims), jnp.float32),   # q (scaled)
                pltpu.VMEM((tq, 1), jnp.float32),      # running max m
                pltpu.VMEM((tq, 1), jnp.float32),      # running sum l
                pltpu.VMEM((tq, dims), jnp.float32),   # output accumulator
                pltpu.VMEM((S, dims), jnp.float32),    # projected K cache (per batch)
                pltpu.VMEM((S, dims), jnp.float32),    # projected V cache (per batch)
            ],
        ),
        compiler_params=pltpu.CompilerParams(
            # qi carries the per-batch K/V cache dependency -> "arbitrary".
            dimension_semantics=("parallel", "arbitrary", "arbitrary"),
        ),
    )(x, x, wq, b_q, w_kv, b_kv)
    return out


def init_params(key, d_model, dims):
    """Mimic nn.Linear default init (uniform +-1/sqrt(fan_in)); weights stored
    as (d_model, dims) == transpose of the PyTorch (dims, d_model) weight."""
    bound = 1.0 / math.sqrt(d_model)
    ks = jax.random.split(key, 6)
    wq = jax.random.uniform(ks[0], (d_model, dims), jnp.float32, -bound, bound)
    wk = jax.random.uniform(ks[1], (d_model, dims), jnp.float32, -bound, bound)
    wv = jax.random.uniform(ks[2], (d_model, dims), jnp.float32, -bound, bound)
    bq = jax.random.uniform(ks[3], (dims,), jnp.float32, -bound, bound)
    bk = jax.random.uniform(ks[4], (dims,), jnp.float32, -bound, bound)
    bv = jax.random.uniform(ks[5], (dims,), jnp.float32, -bound, bound)
    return wq, wk, wv, bq, bk, bv


def reference_attention(x, wq, wk, wv, bq, bk, bv):
    """Pure-JAX reference matching the PyTorch forward (no mask applied)."""
    dims = wq.shape[1]
    q = x @ wq + bq
    k = x @ wk + bk
    v = x @ wv + bv
    s = jnp.einsum("bqd,bkd->bqk", q, k) * dims ** (-0.5)
    p = jax.nn.softmax(s, axis=-1)
    return jnp.einsum("bqk,bkd->bqd", p, v)


if __name__ == "__main__":
    B, S, d_model, dims = 2, SEQ_LENGTH, 32, 16

    key = jax.random.PRNGKey(0)
    kx, kp = jax.random.split(key)
    x = jax.random.normal(kx, (B, S, d_model), dtype=jnp.float32)
    wq, wk, wv, bq, bk, bv = init_params(kp, d_model, dims)

    out = masked_attention(x, wq, wk, wv, bq, bk, bv)
    out = jax.block_until_ready(out)

    ref = reference_attention(x, wq, wk, wv, bq, bk, bv)
    assert out.shape == (B, S, dims)
    assert jnp.allclose(out, ref, atol=1e-5, rtol=1e-5), "mismatch vs reference"

    # Also exercise the multi-tile path (several q/kv tiles per batch) to cover
    # the per-batch K/V cache reuse logic.
    out2 = jax.block_until_ready(
        masked_attention(x, wq, wk, wv, bq, bk, bv, block_q=32, block_kv=32))
    assert jnp.allclose(out2, ref, atol=1e-5, rtol=1e-5), "mismatch (tiled) vs reference"

    print("KERNEL_OK")
</pallas_src>

<mosaic_0001>
module attributes {stable_mosaic.version = 11 : i64} {
  func.func @_flash_attn_kernel(%arg0: i32, %arg1: i32, %arg2: i32, %arg3: memref<1x128x32xf32, #tpu.memory_space<vmem>>, %arg4: memref<1x128x32xf32, #tpu.memory_space<vmem>>, %arg5: memref<32x16xf32, #tpu.memory_space<vmem>>, %arg6: memref<1x16xf32, #tpu.memory_space<vmem>>, %arg7: memref<32x32xf32, #tpu.memory_space<vmem>>, %arg8: memref<1x32xf32, #tpu.memory_space<vmem>>, %arg9: memref<1x128x16xf32, #tpu.memory_space<vmem>>, %arg10: memref<128x16xf32, #tpu.memory_space<vmem>>, %arg11: memref<128x1xf32, #tpu.memory_space<vmem>>, %arg12: memref<128x1xf32, #tpu.memory_space<vmem>>, %arg13: memref<128x16xf32, #tpu.memory_space<vmem>>, %arg14: memref<128x16xf32, #tpu.memory_space<vmem>>, %arg15: memref<128x16xf32, #tpu.memory_space<vmem>>) attributes {dimension_semantics = [#tpu.dimension_semantics<parallel>, #tpu.dimension_semantics<arbitrary>, #tpu.dimension_semantics<arbitrary>], iteration_bounds = array<i64: 2, 1, 1>, scalar_prefetch = 0 : i64, scratch_operands = 6 : i64, tpu.core_type = #tpu.core_type<tc>, window_params = [{transform_indices = @transform_0, window_bounds = array<i64: 1, 128, 32>}, {transform_indices = @transform_1, window_bounds = array<i64: 1, 128, 32>}, {pipeline_mode = #tpu.pipeline_mode<synchronous>, transform_indices = @transform_2, window_bounds = array<i64: 32, 16>}, {pipeline_mode = #tpu.pipeline_mode<synchronous>, transform_indices = @transform_3, window_bounds = array<i64: 1, 16>}, {pipeline_mode = #tpu.pipeline_mode<synchronous>, transform_indices = @transform_4, window_bounds = array<i64: 32, 32>}, {pipeline_mode = #tpu.pipeline_mode<synchronous>, transform_indices = @transform_5, window_bounds = array<i64: 1, 32>}, {transform_indices = @transform_6, window_bounds = array<i64: 1, 128, 16>}]} {
    %c128_i32 = arith.constant 128 : i32
    %0 = arith.muli %arg2, %c128_i32 : i32
    %1 = tpu.assume_multiple %0, 128 : i32
    %c0_i32 = arith.constant 0 : i32
    %2 = arith.cmpi eq, %arg2, %c0_i32 : i32
    %3 = arith.extui %2 : i1 to i32
    %c0_i32_0 = arith.constant 0 : i32
    %4 = arith.cmpi ne, %3, %c0_i32_0 : i32
    scf.if %4 {
      %c0_23 = arith.constant 0 : index
      %c0_24 = arith.constant 0 : index
      %c0_25 = arith.constant 0 : index
      %39 = vector.load %arg3[%c0_23, %c0_24, %c0_25] : memref<1x128x32xf32, #tpu.memory_space<vmem>>, vector<1x128x32xf32>
      %40 = vector.shape_cast %39 : vector<1x128x32xf32> to vector<128x32xf32>
      %c0_26 = arith.constant 0 : index
      %c0_27 = arith.constant 0 : index
      %41 = vector.load %arg5[%c0_26, %c0_27] : memref<32x16xf32, #tpu.memory_space<vmem>>, vector<32x16xf32>
      %cst_28 = arith.constant dense<0.000000e+00> : vector<128x16xf32>
      %42 = tpu.matmul %40, %41, %cst_28 {dimension_numbers = #tpu.dot_dimension_numbers<[1], [0], [0], [1], [0, 0, 1, 1], [], []>} : vector<128x32xf32>, vector<32x16xf32>, vector<128x16xf32> -> vector<128x16xf32>
      %c0_29 = arith.constant 0 : index
      %c0_30 = arith.constant 0 : index
      %43 = vector.load %arg6[%c0_29, %c0_30] : memref<1x16xf32, #tpu.memory_space<vmem>>, vector<1x16xf32>
      %44 = vector.shape_cast %43 : vector<1x16xf32> to vector<16xf32>
      %45 = vector.shape_cast %44 : vector<16xf32> to vector<1x16xf32>
      %46 = vector.broadcast %45 : vector<1x16xf32> to vector<128x16xf32>
      %47 = arith.addf %42, %46 : vector<128x16xf32>
      %cst_31 = arith.constant 2.500000e-01 : f32
      %48 = vector.broadcast %cst_31 : f32 to vector<128x16xf32>
      %49 = arith.mulf %47, %48 : vector<128x16xf32>
      %c0_32 = arith.constant 0 : index
      %c0_33 = arith.constant 0 : index
      %50 = vector.load %arg10[%c0_32, %c0_33] : memref<128x16xf32, #tpu.memory_space<vmem>>, vector<128x16xf32>
      tpu.vector_store %arg10[%c0_32, %c0_33], %49 {strides = array<i32>} : memref<128x16xf32, #tpu.memory_space<vmem>>, vector<128x16xf32>,
      %cst_34 = arith.constant 0xFF800000 : f32
      %51 = vector.broadcast %cst_34 : f32 to vector<128x1xf32>
      %c0_35 = arith.constant 0 : index
      %c0_36 = arith.constant 0 : index
      %52 = vector.load %arg11[%c0_35, %c0_36] : memref<128x1xf32, #tpu.memory_space<vmem>>, vector<128x1xf32>
      tpu.vector_store %arg11[%c0_35, %c0_36], %51 {strides = array<i32>} : memref<128x1xf32, #tpu.memory_space<vmem>>, vector<128x1xf32>,
      %cst_37 = arith.constant 0.000000e+00 : f32
      %53 = vector.broadcast %cst_37 : f32 to vector<128x1xf32>
      %c0_38 = arith.constant 0 : index
      %c0_39 = arith.constant 0 : index
      %54 = vector.load %arg12[%c0_38, %c0_39] : memref<128x1xf32, #tpu.memory_space<vmem>>, vector<128x1xf32>
      tpu.vector_store %arg12[%c0_38, %c0_39], %53 {strides = array<i32>} : memref<128x1xf32, #tpu.memory_space<vmem>>, vector<128x1xf32>,
      %cst_40 = arith.constant 0.000000e+00 : f32
      %55 = vector.broadcast %cst_40 : f32 to vector<128x16xf32>
      %c0_41 = arith.constant 0 : index
      %c0_42 = arith.constant 0 : index
      %56 = vector.load %arg13[%c0_41, %c0_42] : memref<128x16xf32, #tpu.memory_space<vmem>>, vector<128x16xf32>
      tpu.vector_store %arg13[%c0_41, %c0_42], %55 {strides = array<i32>} : memref<128x16xf32, #tpu.memory_space<vmem>>, vector<128x16xf32>,
    } else {
    }
    %c0_i32_1 = arith.constant 0 : i32
    %5 = arith.cmpi eq, %arg1, %c0_i32_1 : i32
    %6 = arith.extui %5 : i1 to i32
    %c0_i32_2 = arith.constant 0 : i32
    %7 = arith.cmpi ne, %6, %c0_i32_2 : i32
    scf.if %7 {
      %c0_23 = arith.constant 0 : index
      %c0_24 = arith.constant 0 : index
      %c0_25 = arith.constant 0 : index
      %39 = vector.load %arg4[%c0_23, %c0_24, %c0_25] : memref<1x128x32xf32, #tpu.memory_space<vmem>>, vector<1x128x32xf32>
      %40 = vector.shape_cast %39 : vector<1x128x32xf32> to vector<128x32xf32>
      %c0_26 = arith.constant 0 : index
      %c0_27 = arith.constant 0 : index
      %41 = vector.load %arg7[%c0_26, %c0_27] : memref<32x32xf32, #tpu.memory_space<vmem>>, vector<32x32xf32>
      %cst_28 = arith.constant dense<0.000000e+00> : vector<128x32xf32>
      %42 = tpu.matmul %40, %41, %cst_28 {dimension_numbers = #tpu.dot_dimension_numbers<[1], [0], [0], [1], [0, 0, 1, 1], [], []>} : vector<128x32xf32>, vector<32x32xf32>, vector<128x32xf32> -> vector<128x32xf32>
      %c0_29 = arith.constant 0 : index
      %c0_30 = arith.constant 0 : index
      %43 = vector.load %arg8[%c0_29, %c0_30] : memref<1x32xf32, #tpu.memory_space<vmem>>, vector<1x32xf32>
      %44 = vector.shape_cast %43 : vector<1x32xf32> to vector<32xf32>
      %45 = vector.shape_cast %44 : vector<32xf32> to vector<1x32xf32>
      %46 = vector.broadcast %45 : vector<1x32xf32> to vector<128x32xf32>
      %47 = arith.addf %42, %46 : vector<128x32xf32>
      %48 = vector.extract_strided_slice %47 {offsets = [0, 0], sizes = [128, 16], strides = [1, 1]} : vector<128x32xf32> to vector<128x16xf32>
      %49 = arith.index_cast %1 : i32 to index
      %c0_31 = arith.constant 0 : index
      %50 = vector.load %arg14[%49, %c0_31] : memref<128x16xf32, #tpu.memory_space<vmem>>, vector<128x16xf32>
      tpu.vector_store %arg14[%49, %c0_31], %48 {strides = array<i32>} : memref<128x16xf32, #tpu.memory_space<vmem>>, vector<128x16xf32>,
      %51 = vector.extract_strided_slice %47 {offsets = [0, 16], sizes = [128, 16], strides = [1, 1]} : vector<128x32xf32> to vector<128x16xf32>
      %52 = arith.index_cast %1 : i32 to index
      %c0_32 = arith.constant 0 : index
      %53 = vector.load %arg15[%52, %c0_32] : memref<128x16xf32, #tpu.memory_space<vmem>>, vector<128x16xf32>
      tpu.vector_store %arg15[%52, %c0_32], %51 {strides = array<i32>} : memref<128x16xf32, #tpu.memory_space<vmem>>, vector<128x16xf32>,
    } else {
    }
    %8 = arith.index_cast %1 : i32 to index
    %c0 = arith.constant 0 : index
    %9 = vector.load %arg14[%8, %c0] : memref<128x16xf32, #tpu.memory_space<vmem>>, vector<128x16xf32>
    %10 = arith.index_cast %1 : i32 to index
    %c0_3 = arith.constant 0 : index
    %11 = vector.load %arg15[%10, %c0_3] : memref<128x16xf32, #tpu.memory_space<vmem>>, vector<128x16xf32>
    %c0_4 = arith.constant 0 : index
    %c0_5 = arith.constant 0 : index
    %12 = vector.load %arg10[%c0_4, %c0_5] : memref<128x16xf32, #tpu.memory_space<vmem>>, vector<128x16xf32>
    %cst = arith.constant dense<0.000000e+00> : vector<128x128xf32>
    %13 = tpu.matmul %12, %9, %cst {dimension_numbers = #tpu.dot_dimension_numbers<[1], [1], [0], [0], [0, 0, 1, 0], [], []>} : vector<128x16xf32>, vector<128x16xf32>, vector<128x128xf32> -> vector<128x128xf32>
    %c0_6 = arith.constant 0 : index
    %c0_7 = arith.constant 0 : index
    %14 = vector.load %arg11[%c0_6, %c0_7] : memref<128x1xf32, #tpu.memory_space<vmem>>, vector<128x1xf32>
    %cst_8 = arith.constant dense<0xFF800000> : vector<128xf32>
    %15 = vector.multi_reduction <maximumf>, %13, %cst_8 [1] : vector<128x128xf32> to vector<128xf32>
    %16 = vector.shape_cast %15 : vector<128xf32> to vector<128x1xf32>
    %17 = arith.maximumf %14, %16 : vector<128x1xf32>
    %18 = arith.subf %14, %17 : vector<128x1xf32>
    %19 = math.exp %18 : vector<128x1xf32>
    %20 = vector.broadcast %17 : vector<128x1xf32> to vector<128x128xf32>
    %21 = arith.subf %13, %20 : vector<128x128xf32>
    %22 = math.exp %21 : vector<128x128xf32>
    %c0_9 = arith.constant 0 : index
    %c0_10 = arith.constant 0 : index
    %23 = vector.load %arg12[%c0_9, %c0_10] : memref<128x1xf32, #tpu.memory_space<vmem>>, vector<128x1xf32>
    %24 = arith.mulf %19, %23 : vector<128x1xf32>
    %cst_11 = arith.constant dense<0.000000e+00> : vector<128xf32>
    %25 = vector.multi_reduction <add>, %22, %cst_11 [1] : vector<128x128xf32> to vector<128xf32>
    %26 = vector.shape_cast %25 : vector<128xf32> to vector<128x1xf32>
    %27 = arith.addf %24, %26 : vector<128x1xf32>
    %c0_12 = arith.constant 0 : index
    %c0_13 = arith.constant 0 : index
    %28 = vector.load %arg12[%c0_12, %c0_13] : memref<128x1xf32, #tpu.memory_space<vmem>>, vector<128x1xf32>
    tpu.vector_store %arg12[%c0_12, %c0_13], %27 {strides = array<i32>} : memref<128x1xf32, #tpu.memory_space<vmem>>, vector<128x1xf32>,
    %c0_14 = arith.constant 0 : index
    %c0_15 = arith.constant 0 : index
    %29 = vector.load %arg13[%c0_14, %c0_15] : memref<128x16xf32, #tpu.memory_space<vmem>>, vector<128x16xf32>
    %30 = vector.broadcast %19 : vector<128x1xf32> to vector<128x16xf32>
    %31 = arith.mulf %30, %29 : vector<128x16xf32>
    %cst_16 = arith.constant dense<0.000000e+00> : vector<128x16xf32>
    %32 = tpu.matmul %22, %11, %cst_16 {dimension_numbers = #tpu.dot_dimension_numbers<[1], [0], [0], [1], [0, 0, 1, 1], [], []>} : vector<128x128xf32>, vector<128x16xf32>, vector<128x16xf32> -> vector<128x16xf32>
    %33 = arith.addf %31, %32 : vector<128x16xf32>
    %c0_17 = arith.constant 0 : index
    %c0_18 = arith.constant 0 : index
    %34 = vector.load %arg13[%c0_17, %c0_18] : memref<128x16xf32, #tpu.memory_space<vmem>>, vector<128x16xf32>
    tpu.vector_store %arg13[%c0_17, %c0_18], %33 {strides = array<i32>} : memref<128x16xf32, #tpu.memory_space<vmem>>, vector<128x16xf32>,
    %c0_19 = arith.constant 0 : index
    %c0_20 = arith.constant 0 : index
    %35 = vector.load %arg11[%c0_19, %c0_20] : memref<128x1xf32, #tpu.memory_space<vmem>>, vector<128x1xf32>
    tpu.vector_store %arg11[%c0_19, %c0_20], %17 {strides = array<i32>} : memref<128x1xf32, #tpu.memory_space<vmem>>, vector<128x1xf32>,
    %c0_i32_21 = arith.constant 0 : i32
    %36 = arith.cmpi eq, %arg2, %c0_i32_21 : i32
    %37 = arith.extui %36 : i1 to i32
    %c0_i32_22 = arith.constant 0 : i32
    %38 = arith.cmpi ne, %37, %c0_i32_22 : i32
    scf.if %38 {
      %c0_23 = arith.constant 0 : index
      %c0_24 = arith.constant 0 : index
      %39 = vector.load %arg13[%c0_23, %c0_24] : memref<128x16xf32, #tpu.memory_space<vmem>>, vector<128x16xf32>
      %c0_25 = arith.constant 0 : index
      %c0_26 = arith.constant 0 : index
      %40 = vector.load %arg12[%c0_25, %c0_26] : memref<128x1xf32, #tpu.memory_space<vmem>>, vector<128x1xf32>
      %41 = vector.broadcast %40 : vector<128x1xf32> to vector<128x16xf32>
      %42 = arith.divf %39, %41 : vector<128x16xf32>
      %c0_27 = arith.constant 0 : index
      %c0_28 = arith.constant 0 : index
      %c0_29 = arith.constant 0 : index
      %43 = vector.load %arg9[%c0_27, %c0_28, %c0_29] : memref<1x128x16xf32, #tpu.memory_space<vmem>>, vector<1x128x16xf32>
      %44 = vector.shape_cast %43 : vector<1x128x16xf32> to vector<128x16xf32>
      %45 = vector.shape_cast %42 : vector<128x16xf32> to vector<1x128x16xf32>
      tpu.vector_store %arg9[%c0_27, %c0_28, %c0_29], %45 {strides = array<i32>} : memref<1x128x16xf32, #tpu.memory_space<vmem>>, vector<1x128x16xf32>,
    } else {
    }
    return
  }
  func.func @transform_0(%arg0: i32, %arg1: i32, %arg2: i32) -> (i32, i32, i32) {
    %c0_i32 = arith.constant 0 : i32
    %c0_i32_0 = arith.constant 0 : i32
    return %arg0, %arg1, %c0_i32 : i32, i32, i32
  }
  func.func @transform_1(%arg0: i32, %arg1: i32, %arg2: i32) -> (i32, i32, i32) {
    %c0_i32 = arith.constant 0 : i32
    %c0_i32_0 = arith.constant 0 : i32
    return %arg0, %arg2, %c0_i32 : i32, i32, i32
  }
  func.func @transform_2(%arg0: i32, %arg1: i32, %arg2: i32) -> (i32, i32) {
    %c0_i32 = arith.constant 0 : i32
    %c0_i32_0 = arith.constant 0 : i32
    %c0_i32_1 = arith.constant 0 : i32
    return %c0_i32, %c0_i32_0 : i32, i32
  }
  func.func @transform_3(%arg0: i32, %arg1: i32, %arg2: i32) -> (i32, i32) {
    %c0_i32 = arith.constant 0 : i32
    %c0_i32_0 = arith.constant 0 : i32
    %c0_i32_1 = arith.constant 0 : i32
    return %c0_i32, %c0_i32_0 : i32, i32
  }
  func.func @transform_4(%arg0: i32, %arg1: i32, %arg2: i32) -> (i32, i32) {
    %c0_i32 = arith.constant 0 : i32
    %c0_i32_0 = arith.constant 0 : i32
    %c0_i32_1 = arith.constant 0 : i32
    return %c0_i32, %c0_i32_0 : i32, i32
  }
  func.func @transform_5(%arg0: i32, %arg1: i32, %arg2: i32) -> (i32, i32) {
    %c0_i32 = arith.constant 0 : i32
    %c0_i32_0 = arith.constant 0 : i32
    %c0_i32_1 = arith.constant 0 : i32
    return %c0_i32, %c0_i32_0 : i32, i32
  }
  func.func @transform_6(%arg0: i32, %arg1: i32, %arg2: i32) -> (i32, i32, i32) {
    %c0_i32 = arith.constant 0 : i32
    %c0_i32_0 = arith.constant 0 : i32
    return %arg0, %arg1, %c0_i32 : i32, i32, i32
  }
}

</mosaic_0001>

<llo_original>
// kernel: tpu_custom_call.1
$region0: #{tpu_custom_call.1}
  #allocation0 [shape = 'u32[]', space=smem, size = 0x4, offset = 0x4, fixed_abs, tag = 'smem constant byte address 0x4 - core index']
  #allocation1 [shape = 'u32[144,128]{1,0:T(1,128)}', space=vmem, size = 0x12000, scoped, tag = 'internal scratch']
  #allocation2 [shape = 'f32[128,16]{1,0:T(8,128)}', space=vmem, size = 0x10000, scoped, tag = 'scratch operand']
  #allocation3 [shape = 'f32[128,1]{1,0:T(8,128)}', space=vmem, size = 0x10000, scoped, tag = 'scratch operand']
  #allocation4 [shape = 'f32[128,1]{1,0:T(8,128)}', space=vmem, size = 0x10000, scoped, tag = 'scratch operand']
  #allocation5 [shape = 'f32[128,16]{1,0:T(8,128)}', space=vmem, size = 0x10000, scoped, tag = 'scratch operand']
  #allocation6 [shape = 'f32[128,16]{1,0:T(8,128)}', space=vmem, size = 0x10000, scoped, tag = 'scratch operand']
  #allocation7 [shape = 'f32[128,16]{1,0:T(8,128)}', space=vmem, size = 0x10000, scoped, tag = 'scratch operand']
  %s0 = inlined_call_operand.vmem [shape: f32[2,128,32], index: 0, kind: input, shape index: {}]
  %s1 = inlined_call_operand.vmem [shape: f32[2,128,32], index: 1, kind: input, shape index: {}]
  %s2 = inlined_call_operand.vmem [shape: f32[32,16], index: 2, kind: input, shape index: {}]
  %s3 = inlined_call_operand.vmem [shape: f32[1,16], index: 3, kind: input, shape index: {}]
  %s4 = inlined_call_operand.vmem [shape: f32[32,32], index: 4, kind: input, shape index: {}]
  %s5 = inlined_call_operand.vmem [shape: f32[1,32], index: 5, kind: input, shape index: {}]
  %s6 = inlined_call_operand.vmem [shape: f32[2,128,16], index: 6, kind: output, shape index: {}]
  %s7 = sld [smem:[#allocation0]]
  $region69: #{tpu_custom_call.1} parent=0
    _
  %s9 = ssub.s32 1, %s7
  %s10 = scalar_select 0, %s9, %s7
  loop: start=0, step=1, limit=4
  $region2: #{tpu_custom_call.1} parent=0 // loop_pre_header
    _
  $region3: #{tpu_custom_call.1} parent=0 // loop_header
    %s12 = sphi 0, %s16
    %p13 = scmp.ge.s32.totalorder %s12, 4
    %s19 = sphi 0, %s38
    %s20 = sphi 0, %s34
    %s21 = sphi 0, %s30
    %s22 = sphi 0, %s19
    %s23 = sphi 0, %s20
    %s24 = sphi 0, %s21
    %s25 = sphi 0, %s22
    %s26 = sphi 0, %s23
    %s27 = sphi 0, %s24
    %s43 = sphi 0, %s45
    %s46 = sphi 0, %s43
    %s47 = sphi 0, %s46
    %s63 = sphi 0, %s47
    %s71 = sphi 0, %s73
    %s74 = sphi 0, %s71
    %s75 = sphi 0, %s74
    %s91 = sphi 0, %s75
    %s95 = sphi 0, %s95
    %s97 = sphi 0, %s95
    %s98 = sphi 0, %s97
    %s112 = sphi 0, %s98
    %s116 = sphi 0, %s116
    %s118 = sphi 0, %s116
    %s119 = sphi 0, %s118
    %s133 = sphi 0, %s119
    %s137 = sphi 0, %s137
    %s139 = sphi 0, %s137
    %s140 = sphi 0, %s139
    %s154 = sphi 0, %s140
    %s158 = sphi 0, %s158
    %s160 = sphi 0, %s158
    %s161 = sphi 0, %s160
    %s175 = sphi 0, %s161
    %s183 = sphi 0, %s185
    %s186 = sphi 0, %s183
    %s187 = sphi 0, %s186
    %s203 = sphi 0, %s187
  $region4: #{tpu_custom_call.1} parent=0 // loop_header_branch
    %15 = sbr.rel (%p13) target = $region8
  $region5: #{tpu_custom_call.1} parent=0 // loop_body
    %s17 = ssub.s32 %s12, 1
    %s18 = ssub.s32 %s12, 2
    %s28 = sadd.s32 1, %s21
    %p29 = scmp.ge.s32.totalorder %s28, 1
    %s30 = scalar_select %p29, 0, %s28
    %s31 = sadd.s32 1, %s20
    %s32 = scalar_select %p29, %s31, %s20
    %p33 = scmp.ge.s32.totalorder %s32, 1
    %s34 = scalar_select %p33, 0, %s32
    %s35 = sadd.s32 1, %s19
    %s36 = scalar_select %p33, %s35, %s19
    %p37 = scmp.ge.s32.totalorder %s36, 2
    %s38 = scalar_select %p37, 0, %s36
    %s39 = ssub.s32 %s19, %s38
    %s40 = ssub.s32 %s20, %s34
    %s41 = sor.u32 %s39, %s40
    %p42 = scmp.eq.s32.totalorder %s41, 0
    %s44 = sadd.s32 %s43, 1
    %s45 = scalar_select %p42, %s43, %s44
    %p48 = pneg %p42
    %p49 = scmp.eq.s32.totalorder %s12, 1
    %p50 = por %p48, %p49
    %p51 = scmp.ne.s32.totalorder %s43, %s46
    %p52 = scmp.eq.s32.totalorder %s12, 0
    %p53 = por %p51, %p52
    %p54 = scmp.ne.s32.totalorder %s43, %s46
    %p55 = scmp.eq.s32.totalorder %s17, 1
    %p56 = por %p54, %p55
    %p57 = scmp.ne.s32.totalorder %s46, %s47
    %p58 = scmp.eq.s32.totalorder %s17, 0
    %p59 = por %p57, %p58
    %p60 = scmp.ne.s32.totalorder %s46, %s47
    %p61 = scmp.eq.s32.totalorder %s18, 1
    %p62 = por %p60, %p61
    %p64 = scmp.ne.s32.totalorder %s47, %s63
    %p65 = scmp.eq.s32.totalorder %s18, 0
    %p66 = por %p64, %p65
    %s67 = ssub.s32 %s19, %s38
    %s68 = ssub.s32 %s21, %s30
    %s69 = sor.u32 %s67, %s68
    %p70 = scmp.eq.s32.totalorder %s69, 0
    %s72 = sadd.s32 %s71, 1
    %s73 = scalar_select %p70, %s71, %s72
    %p76 = pneg %p70
    %p77 = scmp.eq.s32.totalorder %s12, 1
    %p78 = por %p76, %p77
    %p79 = scmp.ne.s32.totalorder %s71, %s74
    %p80 = scmp.eq.s32.totalorder %s12, 0
    %p81 = por %p79, %p80
    %p82 = scmp.ne.s32.totalorder %s71, %s74
    %p83 = scmp.eq.s32.totalorder %s17, 1
    %p84 = por %p82, %p83
    %p85 = scmp.ne.s32.totalorder %s74, %s75
    %p86 = scmp.eq.s32.totalorder %s17, 0
    %p87 = por %p85, %p86
    %p88 = scmp.ne.s32.totalorder %s74, %s75
    %p89 = scmp.eq.s32.totalorder %s18, 1
    %p90 = por %p88, %p89
    %p92 = scmp.ne.s32.totalorder %s75, %s91
    %p93 = scmp.eq.s32.totalorder %s18, 0
    %p94 = por %p92, %p93
    %s96 = sadd.s32 %s95, 1
    %p99 = scmp.eq.s32.totalorder %s12, 1
    %p100 = scmp.ne.s32.totalorder %s95, %s97
    %p101 = scmp.eq.s32.totalorder %s12, 0
    %p102 = por %p100, %p101
    %p103 = scmp.ne.s32.totalorder %s95, %s97
    %p104 = scmp.eq.s32.totalorder %s17, 1
    %p105 = por %p103, %p104
    %p106 = scmp.ne.s32.totalorder %s97, %s98
    %p107 = scmp.eq.s32.totalorder %s17, 0
    %p108 = por %p106, %p107
    %p109 = scmp.ne.s32.totalorder %s97, %s98
    %p110 = scmp.eq.s32.totalorder %s18, 1
    %p111 = por %p109, %p110
    %p113 = scmp.ne.s32.totalorder %s98, %s112
    %p114 = scmp.eq.s32.totalorder %s18, 0
    %p115 = por %p113, %p114
    %s117 = sadd.s32 %s116, 1
    %p120 = scmp.eq.s32.totalorder %s12, 1
    %p121 = scmp.ne.s32.totalorder %s116, %s118
    %p122 = scmp.eq.s32.totalorder %s12, 0
    %p123 = por %p121, %p122
    %p124 = scmp.ne.s32.totalorder %s116, %s118
    %p125 = scmp.eq.s32.totalorder %s17, 1
    %p126 = por %p124, %p125
    %p127 = scmp.ne.s32.totalorder %s118, %s119
    %p128 = scmp.eq.s32.totalorder %s17, 0
    %p129 = por %p127, %p128
    %p130 = scmp.ne.s32.totalorder %s118, %s119
    %p131 = scmp.eq.s32.totalorder %s18, 1
    %p132 = por %p130, %p131
    %p134 = scmp.ne.s32.totalorder %s119, %s133
    %p135 = scmp.eq.s32.totalorder %s18, 0
    %p136 = por %p134, %p135
    %s138 = sadd.s32 %s137, 1
    %p141 = scmp.eq.s32.totalorder %s12, 1
    %p142 = scmp.ne.s32.totalorder %s137, %s139
    %p143 = scmp.eq.s32.totalorder %s12, 0
    %p144 = por %p142, %p143
    %p145 = scmp.ne.s32.totalorder %s137, %s139
    %p146 = scmp.eq.s32.totalorder %s17, 1
    %p147 = por %p145, %p146
    %p148 = scmp.ne.s32.totalorder %s139, %s140
    %p149 = scmp.eq.s32.totalorder %s17, 0
    %p150 = por %p148, %p149
    %p151 = scmp.ne.s32.totalorder %s139, %s140
    %p152 = scmp.eq.s32.totalorder %s18, 1
    %p153 = por %p151, %p152
    %p155 = scmp.ne.s32.totalorder %s140, %s154
    %p156 = scmp.eq.s32.totalorder %s18, 0
    %p157 = por %p155, %p156
    %s159 = sadd.s32 %s158, 1
    %p162 = scmp.eq.s32.totalorder %s12, 1
    %p163 = scmp.ne.s32.totalorder %s158, %s160
    %p164 = scmp.eq.s32.totalorder %s12, 0
    %p165 = por %p163, %p164
    %p166 = scmp.ne.s32.totalorder %s158, %s160
    %p167 = scmp.eq.s32.totalorder %s17, 1
    %p168 = por %p166, %p167
    %p169 = scmp.ne.s32.totalorder %s160, %s161
    %p170 = scmp.eq.s32.totalorder %s17, 0
    %p171 = por %p169, %p170
    %p172 = scmp.ne.s32.totalorder %s160, %s161
    %p173 = scmp.eq.s32.totalorder %s18, 1
    %p174 = por %p172, %p173
    %p176 = scmp.ne.s32.totalorder %s161, %s175
    %p177 = scmp.eq.s32.totalorder %s18, 0
    %p178 = por %p176, %p177
    %s179 = ssub.s32 %s19, %s38
    %s180 = ssub.s32 %s20, %s34
    %s181 = sor.u32 %s179, %s180
    %p182 = scmp.eq.s32.totalorder %s181, 0
    %s184 = sadd.s32 %s183, 1
    %s185 = scalar_select %p182, %s183, %s184
    %p188 = pneg %p182
    %p189 = scmp.eq.s32.totalorder %s12, 1
    %p190 = por %p188, %p189
    %p191 = scmp.ne.s32.totalorder %s183, %s186
    %p192 = scmp.eq.s32.totalorder %s12, 0
    %p193 = por %p191, %p192
    %p194 = scmp.ne.s32.totalorder %s183, %s186
    %p195 = scmp.eq.s32.totalorder %s17, 1
    %p196 = por %p194, %p195
    %p197 = scmp.ne.s32.totalorder %s186, %s187
    %p198 = scmp.eq.s32.totalorder %s17, 0
    %p199 = por %p197, %p198
    %p200 = scmp.ne.s32.totalorder %s186, %s187
    %p201 = scmp.eq.s32.totalorder %s18, 1
    %p202 = por %p200, %p201
    %p204 = scmp.ne.s32.totalorder %s187, %s203
    %p205 = scmp.eq.s32.totalorder %s18, 0
    %p206 = por %p204, %p205
    %p207 = scmp.le.s32.totalorder 1, %s12
    %p208 = scmp.lt.s32.totalorder %s12, 3
    %p209 = pnand %p207, %p208
    %p210 = pneg %p209
    // Predicated region
    $region9: #{tpu_custom_call.1} parent=5 // pred_check
      _
    $region10: #{tpu_custom_call.1} parent=5 // pred_check_branch
      %212 = sbr.rel (%p209) target = $region12
    $region11: #{tpu_custom_call.1} parent=5 // pred_region
      %s213 = ssub.s32 %s12, 1
      // Predicated region
      $region13: #{tpu_custom_call.1} parent=11 // pred_check
        %p214 = pneg %p108
      $region14: #{tpu_custom_call.1} parent=11 // pred_check_branch
        %216 = sbr.rel (%p214) target = $region16
      $region15: #{tpu_custom_call.1} parent=11 // pred_region
        _
      $region16: #{tpu_custom_call.1} parent=11 // pred_fallthru
        _
      // Predicated region
      $region17: #{tpu_custom_call.1} parent=11 // pred_check
        %p217 = pneg %p129
      $region18: #{tpu_custom_call.1} parent=11 // pred_check_branch
        %219 = sbr.rel (%p217) target = $region20
      $region19: #{tpu_custom_call.1} parent=11 // pred_region
        _
      $region20: #{tpu_custom_call.1} parent=11 // pred_fallthru
        _
      // Predicated region
      $region21: #{tpu_custom_call.1} parent=11 // pred_check
        %p220 = pneg %p150
      $region22: #{tpu_custom_call.1} parent=11 // pred_check_branch
        %222 = sbr.rel (%p220) target = $region24
      $region23: #{tpu_custom_call.1} parent=11 // pred_region
        _
      $region24: #{tpu_custom_call.1} parent=11 // pred_fallthru
        _
      // Predicated region
      $region25: #{tpu_custom_call.1} parent=11 // pred_check
        %p223 = pneg %p171
      $region26: #{tpu_custom_call.1} parent=11 // pred_check_branch
        %225 = sbr.rel (%p223) target = $region28
      $region27: #{tpu_custom_call.1} parent=11 // pred_region
        _
      $region28: #{tpu_custom_call.1} parent=11 // pred_fallthru
        _
    $region12: #{tpu_custom_call.1} parent=5 // pred_fallthru
      _
    %p226 = scmp.lt.s32.totalorder %s12, 2
    // Predicated region
    $region29: #{tpu_custom_call.1} parent=5 // pred_check
      %p227 = pneg %p226
    $region30: #{tpu_custom_call.1} parent=5 // pred_check_branch
      %229 = sbr.rel (%p227) target = $region32
    $region31: #{tpu_custom_call.1} parent=5 // pred_region
      // Predicated region
      $region33: #{tpu_custom_call.1} parent=31 // pred_check
        %p230 = pneg %p53
      $region34: #{tpu_custom_call.1} parent=31 // pred_check_branch
        %232 = sbr.rel (%p230) target = $region36
      $region35: #{tpu_custom_call.1} parent=31 // pred_region
        %s233 = smul.u32 16, %s20
        %p234 = scmp.lt.s32.totalorder %s19, 1
        %s235 = scalar_select %p234, %s19, 1
        %p236 = scmp.lt.s32.totalorder %s233, 15
        %s237 = scalar_select %p236, %s233, 15
        %s238 = smul.addr %s235, 16
        %s239 = sadd.s32 %s237, %s238
        %s240 = smul.addr %s239, 8
        %s241 = scalar_lea.vmem %s0, %s240
        %s242 = smul.u32 16, %s20
      $region36: #{tpu_custom_call.1} parent=31 // pred_fallthru
        _
      // Predicated region
      $region37: #{tpu_custom_call.1} parent=31 // pred_check
        %p243 = pneg %p81
      $region38: #{tpu_custom_call.1} parent=31 // pred_check_branch
        %245 = sbr.rel (%p243) target = $region40
      $region39: #{tpu_custom_call.1} parent=31 // pred_region
        %s246 = smul.u32 16, %s21
        %p247 = scmp.lt.s32.totalorder %s19, 1
        %s248 = scalar_select %p247, %s19, 1
        %p249 = scmp.lt.s32.totalorder %s246, 15
        %s250 = scalar_select %p249, %s246, 15
        %s251 = smul.addr %s248, 16
        %s252 = sadd.s32 %s250, %s251
        %s253 = smul.addr %s252, 8
        %s254 = scalar_lea.vmem %s1, %s253
        %s255 = smul.u32 16, %s21
      $region40: #{tpu_custom_call.1} parent=31 // pred_fallthru
        _
    $region32: #{tpu_custom_call.1} parent=5 // pred_fallthru
      _
    %p256 = scmp.le.s32.totalorder 1, %s12
    %p257 = scmp.lt.s32.totalorder %s12, 3
    %p258 = pnand %p256, %p257
    %p259 = pneg %p258
    // Predicated region
    $region41: #{tpu_custom_call.1} parent=5 // pred_check
      _
    $region42: #{tpu_custom_call.1} parent=5 // pred_check_branch
      %261 = sbr.rel (%p258) target = $region44
    $region43: #{tpu_custom_call.1} parent=5 // pred_region
      %s262 = ssub.s32 %s12, 1
      %s263 = smul.u32 16, %s23
      %p264 = scmp.lt.s32.totalorder %s22, 1
      %s265 = scalar_select %p264, %s22, 1
      %p266 = scmp.lt.s32.totalorder %s263, 15
      %s267 = scalar_select %p266, %s263, 15
      %s268 = smul.addr %s265, 16
      %s269 = sadd.s32 %s267, %s268
      %s270 = smul.addr %s269, 8
      %s271 = scalar_lea.vmem %s0, %s270
      %p272 = pneg %p59
      %p273 = pneg %p56
      %s274 = smul.u32 16, %s24
      %p275 = scmp.lt.s32.totalorder %s22, 1
      %s276 = scalar_select %p275, %s22, 1
      %p277 = scmp.lt.s32.totalorder %s274, 15
      %s278 = scalar_select %p277, %s274, 15
      %s279 = smul.addr %s276, 16
      %s280 = sadd.s32 %s278, %s279
      %s281 = smul.addr %s280, 8
      %s282 = scalar_lea.vmem %s1, %s281
      %p283 = pneg %p87
      %p284 = pneg %p84
      %p285 = pneg %p108
      %p286 = pneg %p105
      %p287 = pneg %p129
      %p288 = pneg %p126
      %p289 = pneg %p150
      %p290 = pneg %p147
      %p291 = pneg %p171
      %p292 = pneg %p168
      %p293 = pneg %p199
      %p294 = pneg %p196
      %s295 = smul.u32 16, %s23
      %p296 = scmp.lt.s32.totalorder %s22, 1
      %s297 = scalar_select %p296, %s22, 1
      %p298 = scmp.lt.s32.totalorder %s295, 15
      %s299 = scalar_select %p298, %s295, 15
      %s300 = smul.addr %s297, 16
      %s301 = sadd.s32 %s299, %s300
      %s302 = smul.addr %s301, 8
      %s303 = scalar_lea.vmem %s6, %s302
      %s304 = smul.u32 16, %s23
      %p305 = scmp.lt.s32.totalorder %s22, 1
      %s306 = scalar_select %p305, %s22, 1
      %p307 = scmp.lt.s32.totalorder %s304, 15
      %s308 = scalar_select %p307, %s304, 15
      %s309 = smul.addr %s306, 16
      %s310 = sadd.s32 %s308, %s309
      %s311 = smul.addr %s310, 8
      %s312 = scalar_lea.vmem %s0, %s311
      %s313 = smul.u32 16, %s23
      %s314 = smul.u32 16, %s24
      %p315 = scmp.lt.s32.totalorder %s22, 1
      %s316 = scalar_select %p315, %s22, 1
      %p317 = scmp.lt.s32.totalorder %s314, 15
      %s318 = scalar_select %p317, %s314, 15
      %s319 = smul.addr %s316, 16
      %s320 = sadd.s32 %s318, %s319
      %s321 = smul.addr %s320, 8
      %s322 = scalar_lea.vmem %s1, %s321
      %s323 = smul.u32 16, %s24
      %s324 = smul.u32 16, %s23
      %p325 = scmp.lt.s32.totalorder %s22, 1
      %s326 = scalar_select %p325, %s22, 1
      %p327 = scmp.lt.s32.totalorder %s324, 15
      %s328 = scalar_select %p327, %s324, 15
      %s329 = smul.addr %s326, 16
      %s330 = sadd.s32 %s328, %s329
      %s331 = smul.addr %s330, 8
      %s332 = scalar_lea.vmem %s6, %s331
      %s333 = smul.u32 16, %s23
      %s334 = smul.u32 %s24, 128
      %p335 = scmp.eq.s32.totalorder %s24, 0
      // Predicated region
      $region45: #{tpu_custom_call.1} parent=43 // pred_check
        %p336 = pneg %p335
      $region46: #{tpu_custom_call.1} parent=43 // pred_check_branch
        %338 = sbr.rel (%p336) target = $region48
      $region47: #{tpu_custom_call.1} parent=43 // pred_region
        %v339 = vld [vmem:[%s312] sm:$0xff]
        %v340 = vld [vmem:[%s312 + $0x8] sm:$0xff]
        %v341 = vld [vmem:[%s312 + $0x10] sm:$0xff]
        %v342 = vld [vmem:[%s312 + $0x18] sm:$0xff]
        %v343 = vld [vmem:[%s312 + $0x20] sm:$0xff]
        %v344 = vld [vmem:[%s312 + $0x28] sm:$0xff]
        %v345 = vld [vmem:[%s312 + $0x30] sm:$0xff]
        %v346 = vld [vmem:[%s312 + $0x38] sm:$0xff]
        %v347 = vld [vmem:[%s312 + $0x40] sm:$0xff]
        %v348 = vld [vmem:[%s312 + $0x48] sm:$0xff]
        %v349 = vld [vmem:[%s312 + $0x50] sm:$0xff]
        %v350 = vld [vmem:[%s312 + $0x58] sm:$0xff]
        %v351 = vld [vmem:[%s312 + $0x60] sm:$0xff]
        %v352 = vld [vmem:[%s312 + $0x68] sm:$0xff]
        %v353 = vld [vmem:[%s312 + $0x70] sm:$0xff]
        %v354 = vld [vmem:[%s312 + $0x78] sm:$0xff]
        %v355 = vld [vmem:[%s2] sm:$0xff]
        %v356 = vld [vmem:[%s2 + $0x8] sm:$0xff]
        %v357 = vld [vmem:[%s2 + $0x10] sm:$0xff]
        %v358 = vld [vmem:[%s2 + $0x18] sm:$0xff]
        %v359 = vld [vmem:[%s3] sm:$0x1]
        %v361 = vlaneseq
        %v362 = vshrl.u32 %v361, 7
        %v363 = vsub.s32 0, %v362
        %v364 = vrot.slane %v359, %v363
        %vm366 = vcmask 261120
        %v368 = vsel %vm366, %v339, 0
        %v371 = vsel %vm366, %v340, 0
        %v374 = vsel %vm366, %v341, 0
        %v377 = vsel %vm366, %v342, 0
        %v380 = vsel %vm366, %v343, 0
        %v383 = vsel %vm366, %v344, 0
        %v386 = vsel %vm366, %v345, 0
        %v389 = vsel %vm366, %v346, 0
        %v392 = vsel %vm366, %v347, 0
        %v395 = vsel %vm366, %v348, 0
        %v398 = vsel %vm366, %v349, 0
        %v401 = vsel %vm366, %v350, 0
        %v404 = vsel %vm366, %v351, 0
        %v407 = vsel %vm366, %v352, 0
        %v410 = vsel %vm366, %v353, 0
        %v413 = vsel %vm366, %v354, 0
        %415 = vmatprep.subr.mxu0 0.0
        %416 = vmatpush1.msra.mxu0 %v355
        %417 = vmatprep.subr.mxu0 0.0
        %418 = vmatpush1.msra.mxu0 %v356
        %419 = vmatprep.subr.mxu0 0.0
        %420 = vmatpush1.msra.mxu0 %v357
        %421 = vmatprep.subr.mxu0 0.0
        %422 = vmatpush1.msra.mxu0 %v358
        %423 = vmatprep.subr.mxu0 0.0
        %424 = vmatpush1.msra.mxu0 0.0
        %425 = vmatprep.subr.mxu0 0.0
        %426 = vmatpush1.msra.mxu0 0.0
        %427 = vmatprep.subr.mxu0 0.0
        %428 = vmatpush1.msra.mxu0 0.0
        %429 = vmatprep.subr.mxu0 0.0
        %430 = vmatpush1.msra.mxu0 0.0
        %431 = vmatprep.subr.mxu0 0.0
        %432 = vmatpush1.msra.mxu0 0.0
        %433 = vmatprep.subr.mxu0 0.0
        %434 = vmatpush1.msra.mxu0 0.0
        %435 = vmatprep.subr.mxu0 0.0
        %436 = vmatpush1.msra.mxu0 0.0
        %437 = vmatprep.subr.mxu0 0.0
        %438 = vmatpush1.msra.mxu0 0.0
        %439 = vmatprep.subr.mxu0 0.0
        %440 = vmatpush1.msra.mxu0 0.0
        %441 = vmatprep.subr.mxu0 0.0
        %442 = vmatpush1.msra.mxu0 0.0
        %443 = vmatprep.subr.mxu0 0.0
        %444 = vmatpush1.msra.mxu0 0.0
        %445 = vmatprep.subr.mxu0 0.0
        %446 = vmatpush1.msra.mxu0 0.0
        %447 = vmatprep.subr.mxu0 0.0
        %448 = vmatpush1.msra.mxu0 0.0
        %449 = vmatprep.subr.mxu0 0.0
        %450 = vmatpush1.msra.mxu0 0.0
        %451 = vmatprep.subr.mxu0 0.0
        %452 = vmatpush1.msra.mxu0 0.0
        %453 = vmatprep.subr.mxu0 0.0
        %454 = vmatpush1.msra.mxu0 0.0
        %455 = vmatprep.subr.mxu0 0.0
        %456 = vmatpush1.msra.mxu0 0.0
        %457 = vmatprep.subr.mxu0 0.0
        %458 = vmatpush1.msra.mxu0 0.0
        %459 = vmatprep.subr.mxu0 0.0
        %460 = vmatpush1.msra.mxu0 0.0
        %461 = vmatprep.subr.mxu0 0.0
        %462 = vmatpush1.msra.mxu0 0.0
        %463 = vmatprep.subr.mxu0 0.0
        %464 = vmatpush1.msra.mxu0 0.0
        %465 = vmatprep.subr.mxu0 0.0
        %466 = vmatpush1.msra.mxu0 0.0
        %467 = vmatprep.subr.mxu0 0.0
        %468 = vmatpush1.msra.mxu0 0.0
        %469 = vmatprep.subr.mxu0 0.0
        %470 = vmatpush1.msra.mxu0 0.0
        %471 = vmatprep.subr.mxu0 0.0
        %472 = vmatpush1.msra.mxu0 0.0
        %473 = vmatprep.subr.mxu0 0.0
        %474 = vmatpush1.msra.mxu0 0.0
        %475 = vmatprep.subr.mxu0 0.0
        %476 = vmatpush1.msra.mxu0 0.0
        %477 = vmatprep.subr.mxu0 0.0
        %478 = vmatpush1.msra.mxu0 0.0
        %479 = vmatprep.mubr.f32.mxu0 0.0
        %480 = vmatmul.mubr.f32.gmra.mrb[0].mxu0 %v368
        %v481 = vpop.f32.mrb[0].mxu0
        %v482 = vadd.f32 %v364, %v481
        %v483 = vpop.f32.mrb[0].mxu0
        %484 = vmatprep.mubr.f32.mxu0 0.0
        %485 = vmatmul.mubr.f32.gmra.mrb[0].mxu0 %v371
        %v486 = vpop.f32.mrb[0].mxu0
        %v487 = vadd.f32 %v364, %v486
        %v488 = vpop.f32.mrb[0].mxu0
        %489 = vmatprep.mubr.f32.mxu0 0.0
        %490 = vmatmul.mubr.f32.gmra.mrb[0].mxu0 %v374
        %v491 = vpop.f32.mrb[0].mxu0
        %v492 = vadd.f32 %v364, %v491
        %v493 = vpop.f32.mrb[0].mxu0
        %494 = vmatprep.mubr.f32.mxu0 0.0
        %495 = vmatmul.mubr.f32.gmra.mrb[0].mxu0 %v377
        %v496 = vpop.f32.mrb[0].mxu0
        %v497 = vadd.f32 %v364, %v496
        %v498 = vpop.f32.mrb[0].mxu0
        %499 = vmatprep.mubr.f32.mxu0 0.0
        %500 = vmatmul.mubr.f32.gmra.mrb[0].mxu0 %v380
        %v501 = vpop.f32.mrb[0].mxu0
        %v502 = vadd.f32 %v364, %v501
        %v503 = vpop.f32.mrb[0].mxu0
        %504 = vmatprep.mubr.f32.mxu0 0.0
        %505 = vmatmul.mubr.f32.gmra.mrb[0].mxu0 %v383
        %v506 = vpop.f32.mrb[0].mxu0
        %v507 = vadd.f32 %v364, %v506
        %v508 = vpop.f32.mrb[0].mxu0
        %509 = vmatprep.mubr.f32.mxu0 0.0
        %510 = vmatmul.mubr.f32.gmra.mrb[0].mxu0 %v386
        %v511 = vpop.f32.mrb[0].mxu0
        %v512 = vadd.f32 %v364, %v511
        %v513 = vpop.f32.mrb[0].mxu0
        %514 = vmatprep.mubr.f32.mxu0 0.0
        %515 = vmatmul.mubr.f32.gmra.mrb[0].mxu0 %v389
        %v516 = vpop.f32.mrb[0].mxu0
        %v517 = vadd.f32 %v364, %v516
        %v518 = vpop.f32.mrb[0].mxu0
        %519 = vmatprep.mubr.f32.mxu0 0.0
        %520 = vmatmul.mubr.f32.gmra.mrb[0].mxu0 %v392
        %v521 = vpop.f32.mrb[0].mxu0
        %v522 = vadd.f32 %v364, %v521
        %v523 = vpop.f32.mrb[0].mxu0
        %524 = vmatprep.mubr.f32.mxu0 0.0
        %525 = vmatmul.mubr.f32.gmra.mrb[0].mxu0 %v395
        %v526 = vpop.f32.mrb[0].mxu0
        %v527 = vadd.f32 %v364, %v526
        %v528 = vpop.f32.mrb[0].mxu0
        %529 = vmatprep.mubr.f32.mxu0 0.0
        %530 = vmatmul.mubr.f32.gmra.mrb[0].mxu0 %v398
        %v531 = vpop.f32.mrb[0].mxu0
        %v532 = vadd.f32 %v364, %v531
        %v533 = vpop.f32.mrb[0].mxu0
        %534 = vmatprep.mubr.f32.mxu0 0.0
        %535 = vmatmul.mubr.f32.gmra.mrb[0].mxu0 %v401
        %v536 = vpop.f32.mrb[0].mxu0
        %v537 = vadd.f32 %v364, %v536
        %v538 = vpop.f32.mrb[0].mxu0
        %539 = vmatprep.mubr.f32.mxu0 0.0
        %540 = vmatmul.mubr.f32.gmra.mrb[0].mxu0 %v404
        %v541 = vpop.f32.mrb[0].mxu0
        %v542 = vadd.f32 %v364, %v541
        %v543 = vpop.f32.mrb[0].mxu0
        %544 = vmatprep.mubr.f32.mxu0 0.0
        %545 = vmatmul.mubr.f32.gmra.mrb[0].mxu0 %v407
        %v546 = vpop.f32.mrb[0].mxu0
        %v547 = vadd.f32 %v364, %v546
        %v548 = vpop.f32.mrb[0].mxu0
        %549 = vmatprep.mubr.f32.mxu0 0.0
        %550 = vmatmul.mubr.f32.gmra.mrb[0].mxu0 %v410
        %v551 = vpop.f32.mrb[0].mxu0
        %v552 = vadd.f32 %v364, %v551
        %v553 = vpop.f32.mrb[0].mxu0
        %554 = vmatprep.mubr.f32.mxu0 0.0
        %555 = vmatmul.mubr.f32.gmra.mrb[0].mxu0 %v413
        %v556 = vpop.f32.mrb[0].mxu0
        %v557 = vadd.f32 %v364, %v556
        %v558 = vpop.f32.mrb[0].mxu0
        %559 = vdwg.mxu0
        %v560 = vmul.f32 %v482, 0.25
        %v561 = vmul.f32 %v487, 0.25
        %v562 = vmul.f32 %v492, 0.25
        %v563 = vmul.f32 %v497, 0.25
        %v564 = vmul.f32 %v502, 0.25
        %v565 = vmul.f32 %v507, 0.25
        %v566 = vmul.f32 %v512, 0.25
        %v567 = vmul.f32 %v517, 0.25
        %v568 = vmul.f32 %v522, 0.25
        %v569 = vmul.f32 %v527, 0.25
        %v570 = vmul.f32 %v532, 0.25
        %v571 = vmul.f32 %v537, 0.25
        %v572 = vmul.f32 %v542, 0.25
        %v573 = vmul.f32 %v547, 0.25
        %v574 = vmul.f32 %v552, 0.25
        %v575 = vmul.f32 %v557, 0.25
        %vm576 = vcmask 130048
        %577 = vst.msk [vmem:[#allocation2] sm:$0xff] %vm576, %v560
        %578 = vst.msk [vmem:[#allocation2 + $0x8] sm:$0xff] %vm576, %v561
        %579 = vst.msk [vmem:[#allocation2 + $0x10] sm:$0xff] %vm576, %v562
        %580 = vst.msk [vmem:[#allocation2 + $0x18] sm:$0xff] %vm576, %v563
        %581 = vst.msk [vmem:[#allocation2 + $0x20] sm:$0xff] %vm576, %v564
        %582 = vst.msk [vmem:[#allocation2 + $0x28] sm:$0xff] %vm576, %v565
        %583 = vst.msk [vmem:[#allocation2 + $0x30] sm:$0xff] %vm576, %v566
        %584 = vst.msk [vmem:[#allocation2 + $0x38] sm:$0xff] %vm576, %v567
        %585 = vst.msk [vmem:[#allocation2 + $0x40] sm:$0xff] %vm576, %v568
        %586 = vst.msk [vmem:[#allocation2 + $0x48] sm:$0xff] %vm576, %v569
        %587 = vst.msk [vmem:[#allocation2 + $0x50] sm:$0xff] %vm576, %v570
        %588 = vst.msk [vmem:[#allocation2 + $0x58] sm:$0xff] %vm576, %v571
        %589 = vst.msk [vmem:[#allocation2 + $0x60] sm:$0xff] %vm576, %v572
        %590 = vst.msk [vmem:[#allocation2 + $0x68] sm:$0xff] %vm576, %v573
        %591 = vst.msk [vmem:[#allocation2 + $0x70] sm:$0xff] %vm576, %v574
        %592 = vst.msk [vmem:[#allocation2 + $0x78] sm:$0xff] %vm576, %v575
        %vm593 = vcmask 7168
        %594 = vst.msk [vmem:[#allocation3] sm:$0xff] %vm593, -inf
        %595 = vst.msk [vmem:[#allocation3 + $0x8] sm:$0xff] %vm593, -inf
        %596 = vst.msk [vmem:[#allocation3 + $0x10] sm:$0xff] %vm593, -inf
        %597 = vst.msk [vmem:[#allocation3 + $0x18] sm:$0xff] %vm593, -inf
        %598 = vst.msk [vmem:[#allocation3 + $0x20] sm:$0xff] %vm593, -inf
        %599 = vst.msk [vmem:[#allocation3 + $0x28] sm:$0xff] %vm593, -inf
        %600 = vst.msk [vmem:[#allocation3 + $0x30] sm:$0xff] %vm593, -inf
        %601 = vst.msk [vmem:[#allocation3 + $0x38] sm:$0xff] %vm593, -inf
        %602 = vst.msk [vmem:[#allocation3 + $0x40] sm:$0xff] %vm593, -inf
        %603 = vst.msk [vmem:[#allocation3 + $0x48] sm:$0xff] %vm593, -inf
        %604 = vst.msk [vmem:[#allocation3 + $0x50] sm:$0xff] %vm593, -inf
        %605 = vst.msk [vmem:[#allocation3 + $0x58] sm:$0xff] %vm593, -inf
        %606 = vst.msk [vmem:[#allocation3 + $0x60] sm:$0xff] %vm593, -inf
        %607 = vst.msk [vmem:[#allocation3 + $0x68] sm:$0xff] %vm593, -inf
        %608 = vst.msk [vmem:[#allocation3 + $0x70] sm:$0xff] %vm593, -inf
        %609 = vst.msk [vmem:[#allocation3 + $0x78] sm:$0xff] %vm593, -inf
        %610 = vst.msk [vmem:[#allocation4] sm:$0xff] %vm593, 0.0
        %611 = vst.msk [vmem:[#allocation4 + $0x8] sm:$0xff] %vm593, 0.0
        %612 = vst.msk [vmem:[#allocation4 + $0x10] sm:$0xff] %vm593, 0.0
        %613 = vst.msk [vmem:[#allocation4 + $0x18] sm:$0xff] %vm593, 0.0
        %614 = vst.msk [vmem:[#allocation4 + $0x20] sm:$0xff] %vm593, 0.0
        %615 = vst.msk [vmem:[#allocation4 + $0x28] sm:$0xff] %vm593, 0.0
        %616 = vst.msk [vmem:[#allocation4 + $0x30] sm:$0xff] %vm593, 0.0
        %617 = vst.msk [vmem:[#allocation4 + $0x38] sm:$0xff] %vm593, 0.0
        %618 = vst.msk [vmem:[#allocation4 + $0x40] sm:$0xff] %vm593, 0.0
        %619 = vst.msk [vmem:[#allocation4 + $0x48] sm:$0xff] %vm593, 0.0
        %620 = vst.msk [vmem:[#allocation4 + $0x50] sm:$0xff] %vm593, 0.0
        %621 = vst.msk [vmem:[#allocation4 + $0x58] sm:$0xff] %vm593, 0.0
        %622 = vst.msk [vmem:[#allocation4 + $0x60] sm:$0xff] %vm593, 0.0
        %623 = vst.msk [vmem:[#allocation4 + $0x68] sm:$0xff] %vm593, 0.0
        %624 = vst.msk [vmem:[#allocation4 + $0x70] sm:$0xff] %vm593, 0.0
        %625 = vst.msk [vmem:[#allocation4 + $0x78] sm:$0xff] %vm593, 0.0
        %626 = vst.msk [vmem:[#allocation5] sm:$0xff] %vm576, 0.0
        %627 = vst.msk [vmem:[#allocation5 + $0x8] sm:$0xff] %vm576, 0.0
        %628 = vst.msk [vmem:[#allocation5 + $0x10] sm:$0xff] %vm576, 0.0
        %629 = vst.msk [vmem:[#allocation5 + $0x18] sm:$0xff] %vm576, 0.0
        %630 = vst.msk [vmem:[#allocation5 + $0x20] sm:$0xff] %vm576, 0.0
        %631 = vst.msk [vmem:[#allocation5 + $0x28] sm:$0xff] %vm576, 0.0
        %632 = vst.msk [vmem:[#allocation5 + $0x30] sm:$0xff] %vm576, 0.0
        %633 = vst.msk [vmem:[#allocation5 + $0x38] sm:$0xff] %vm576, 0.0
        %634 = vst.msk [vmem:[#allocation5 + $0x40] sm:$0xff] %vm576, 0.0
        %635 = vst.msk [vmem:[#allocation5 + $0x48] sm:$0xff] %vm576, 0.0
        %636 = vst.msk [vmem:[#allocation5 + $0x50] sm:$0xff] %vm576, 0.0
        %637 = vst.msk [vmem:[#allocation5 + $0x58] sm:$0xff] %vm576, 0.0
        %638 = vst.msk [vmem:[#allocation5 + $0x60] sm:$0xff] %vm576, 0.0
        %639 = vst.msk [vmem:[#allocation5 + $0x68] sm:$0xff] %vm576, 0.0
        %640 = vst.msk [vmem:[#allocation5 + $0x70] sm:$0xff] %vm576, 0.0
        %641 = vst.msk [vmem:[#allocation5 + $0x78] sm:$0xff] %vm576, 0.0
      $region48: #{tpu_custom_call.1} parent=43 // pred_fallthru
        _
      %p642 = scmp.eq.s32.totalorder %s23, 0
      // Predicated region
      $region49: #{tpu_custom_call.1} parent=43 // pred_check
        %p643 = pneg %p642
      $region50: #{tpu_custom_call.1} parent=43 // pred_check_branch
        %645 = sbr.rel (%p643) target = $region52
      $region51: #{tpu_custom_call.1} parent=43 // pred_region
        %v646 = vld [vmem:[%s322] sm:$0xff]
        %v647 = vld [vmem:[%s322 + $0x8] sm:$0xff]
        %v648 = vld [vmem:[%s322 + $0x10] sm:$0xff]
        %v649 = vld [vmem:[%s322 + $0x18] sm:$0xff]
        %v650 = vld [vmem:[%s322 + $0x20] sm:$0xff]
        %v651 = vld [vmem:[%s322 + $0x28] sm:$0xff]
        %v652 = vld [vmem:[%s322 + $0x30] sm:$0xff]
        %v653 = vld [vmem:[%s322 + $0x38] sm:$0xff]
        %v654 = vld [vmem:[%s322 + $0x40] sm:$0xff]
        %v655 = vld [vmem:[%s322 + $0x48] sm:$0xff]
        %v656 = vld [vmem:[%s322 + $0x50] sm:$0xff]
        %v657 = vld [vmem:[%s322 + $0x58] sm:$0xff]
        %v658 = vld [vmem:[%s322 + $0x60] sm:$0xff]
        %v659 = vld [vmem:[%s322 + $0x68] sm:$0xff]
        %v660 = vld [vmem:[%s322 + $0x70] sm:$0xff]
        %v661 = vld [vmem:[%s322 + $0x78] sm:$0xff]
        %v662 = vld [vmem:[%s4] sm:$0xff]
        %v663 = vld [vmem:[%s4 + $0x8] sm:$0xff]
        %v664 = vld [vmem:[%s4 + $0x10] sm:$0xff]
        %v665 = vld [vmem:[%s4 + $0x18] sm:$0xff]
        %v666 = vld [vmem:[%s5] sm:$0x1]
        %v668 = vlaneseq
        %v669 = vshrl.u32 %v668, 7
        %v670 = vsub.s32 0, %v669
        %v671 = vrot.slane %v666, %v670
        %vm673 = vcmask 261120
        %v675 = vsel %vm673, %v646, 0
        %v678 = vsel %vm673, %v647, 0
        %v681 = vsel %vm673, %v648, 0
        %v684 = vsel %vm673, %v649, 0
        %v687 = vsel %vm673, %v650, 0
        %v690 = vsel %vm673, %v651, 0
        %v693 = vsel %vm673, %v652, 0
        %v696 = vsel %vm673, %v653, 0
        %v699 = vsel %vm673, %v654, 0
        %v702 = vsel %vm673, %v655, 0
        %v705 = vsel %vm673, %v656, 0
        %v708 = vsel %vm673, %v657, 0
        %v711 = vsel %vm673, %v658, 0
        %v714 = vsel %vm673, %v659, 0
        %v717 = vsel %vm673, %v660, 0
        %v720 = vsel %vm673, %v661, 0
        %722 = vmatprep.subr.mxu0 0.0
        %723 = vmatpush1.msra.mxu0 %v662
        %724 = vmatprep.subr.mxu0 0.0
        %725 = vmatpush1.msra.mxu0 %v663
        %726 = vmatprep.subr.mxu0 0.0
        %727 = vmatpush1.msra.mxu0 %v664
        %728 = vmatprep.subr.mxu0 0.0
        %729 = vmatpush1.msra.mxu0 %v665
        %730 = vmatprep.subr.mxu0 0.0
        %731 = vmatpush1.msra.mxu0 0.0
        %732 = vmatprep.subr.mxu0 0.0
        %733 = vmatpush1.msra.mxu0 0.0
        %734 = vmatprep.subr.mxu0 0.0
        %735 = vmatpush1.msra.mxu0 0.0
        %736 = vmatprep.subr.mxu0 0.0
        %737 = vmatpush1.msra.mxu0 0.0
        %738 = vmatprep.subr.mxu0 0.0
        %739 = vmatpush1.msra.mxu0 0.0
        %740 = vmatprep.subr.mxu0 0.0
        %741 = vmatpush1.msra.mxu0 0.0
        %742 = vmatprep.subr.mxu0 0.0
        %743 = vmatpush1.msra.mxu0 0.0
        %744 = vmatprep.subr.mxu0 0.0
        %745 = vmatpush1.msra.mxu0 0.0
        %746 = vmatprep.subr.mxu0 0.0
        %747 = vmatpush1.msra.mxu0 0.0
        %748 = vmatprep.subr.mxu0 0.0
        %749 = vmatpush1.msra.mxu0 0.0
        %750 = vmatprep.subr.mxu0 0.0
        %751 = vmatpush1.msra.mxu0 0.0
        %752 = vmatprep.subr.mxu0 0.0
        %753 = vmatpush1.msra.mxu0 0.0
        %754 = vmatprep.subr.mxu0 0.0
        %755 = vmatpush1.msra.mxu0 0.0
        %756 = vmatprep.subr.mxu0 0.0
        %757 = vmatpush1.msra.mxu0 0.0
        %758 = vmatprep.subr.mxu0 0.0
        %759 = vmatpush1.msra.mxu0 0.0
        %760 = vmatprep.subr.mxu0 0.0
        %761 = vmatpush1.msra.mxu0 0.0
        %762 = vmatprep.subr.mxu0 0.0
        %763 = vmatpush1.msra.mxu0 0.0
        %764 = vmatprep.subr.mxu0 0.0
        %765 = vmatpush1.msra.mxu0 0.0
        %766 = vmatprep.subr.mxu0 0.0
        %767 = vmatpush1.msra.mxu0 0.0
        %768 = vmatprep.subr.mxu0 0.0
        %769 = vmatpush1.msra.mxu0 0.0
        %770 = vmatprep.subr.mxu0 0.0
        %771 = vmatpush1.msra.mxu0 0.0
        %772 = vmatprep.subr.mxu0 0.0
        %773 = vmatpush1.msra.mxu0 0.0
        %774 = vmatprep.subr.mxu0 0.0
        %775 = vmatpush1.msra.mxu0 0.0
        %776 = vmatprep.subr.mxu0 0.0
        %777 = vmatpush1.msra.mxu0 0.0
        %778 = vmatprep.subr.mxu0 0.0
        %779 = vmatpush1.msra.mxu0 0.0
        %780 = vmatprep.subr.mxu0 0.0
        %781 = vmatpush1.msra.mxu0 0.0
        %782 = vmatprep.subr.mxu0 0.0
        %783 = vmatpush1.msra.mxu0 0.0
        %784 = vmatprep.subr.mxu0 0.0
        %785 = vmatpush1.msra.mxu0 0.0
        %786 = vmatprep.mubr.f32.mxu0 0.0
        %787 = vmatmul.mubr.f32.gmra.mrb[0].mxu0 %v675
        %v788 = vpop.f32.mrb[0].mxu0
        %v789 = vadd.f32 %v671, %v788
        %v790 = vpop.f32.mrb[0].mxu0
        %791 = vmatprep.mubr.f32.mxu0 0.0
        %792 = vmatmul.mubr.f32.gmra.mrb[0].mxu0 %v678
        %v793 = vpop.f32.mrb[0].mxu0
        %v794 = vadd.f32 %v671, %v793
        %v795 = vpop.f32.mrb[0].mxu0
        %796 = vmatprep.mubr.f32.mxu0 0.0
        %797 = vmatmul.mubr.f32.gmra.mrb[0].mxu0 %v681
        %v798 = vpop.f32.mrb[0].mxu0
        %v799 = vadd.f32 %v671, %v798
        %v800 = vpop.f32.mrb[0].mxu0
        %801 = vmatprep.mubr.f32.mxu0 0.0
        %802 = vmatmul.mubr.f32.gmra.mrb[0].mxu0 %v684
        %v803 = vpop.f32.mrb[0].mxu0
        %v804 = vadd.f32 %v671, %v803
        %v805 = vpop.f32.mrb[0].mxu0
        %806 = vmatprep.mubr.f32.mxu0 0.0
        %807 = vmatmul.mubr.f32.gmra.mrb[0].mxu0 %v687
        %v808 = vpop.f32.mrb[0].mxu0
        %v809 = vadd.f32 %v671, %v808
        %v810 = vpop.f32.mrb[0].mxu0
        %811 = vmatprep.mubr.f32.mxu0 0.0
        %812 = vmatmul.mubr.f32.gmra.mrb[0].mxu0 %v690
        %v813 = vpop.f32.mrb[0].mxu0
        %v814 = vadd.f32 %v671, %v813
        %v815 = vpop.f32.mrb[0].mxu0
        %816 = vmatprep.mubr.f32.mxu0 0.0
        %817 = vmatmul.mubr.f32.gmra.mrb[0].mxu0 %v693
        %v818 = vpop.f32.mrb[0].mxu0
        %v819 = vadd.f32 %v671, %v818
        %v820 = vpop.f32.mrb[0].mxu0
        %821 = vmatprep.mubr.f32.mxu0 0.0
        %822 = vmatmul.mubr.f32.gmra.mrb[0].mxu0 %v696
        %v823 = vpop.f32.mrb[0].mxu0
        %v824 = vadd.f32 %v671, %v823
        %v825 = vpop.f32.mrb[0].mxu0
        %826 = vmatprep.mubr.f32.mxu0 0.0
        %827 = vmatmul.mubr.f32.gmra.mrb[0].mxu0 %v699
        %v828 = vpop.f32.mrb[0].mxu0
        %v829 = vadd.f32 %v671, %v828
        %v830 = vpop.f32.mrb[0].mxu0
        %831 = vmatprep.mubr.f32.mxu0 0.0
        %832 = vmatmul.mubr.f32.gmra.mrb[0].mxu0 %v702
        %v833 = vpop.f32.mrb[0].mxu0
        %v834 = vadd.f32 %v671, %v833
        %v835 = vpop.f32.mrb[0].mxu0
        %836 = vmatprep.mubr.f32.mxu0 0.0
        %837 = vmatmul.mubr.f32.gmra.mrb[0].mxu0 %v705
        %v838 = vpop.f32.mrb[0].mxu0
        %v839 = vadd.f32 %v671, %v838
        %v840 = vpop.f32.mrb[0].mxu0
        %841 = vmatprep.mubr.f32.mxu0 0.0
        %842 = vmatmul.mubr.f32.gmra.mrb[0].mxu0 %v708
        %v843 = vpop.f32.mrb[0].mxu0
        %v844 = vadd.f32 %v671, %v843
        %v845 = vpop.f32.mrb[0].mxu0
        %846 = vmatprep.mubr.f32.mxu0 0.0
        %847 = vmatmul.mubr.f32.gmra.mrb[0].mxu0 %v711
        %v848 = vpop.f32.mrb[0].mxu0
        %v849 = vadd.f32 %v671, %v848
        %v850 = vpop.f32.mrb[0].mxu0
        %851 = vmatprep.mubr.f32.mxu0 0.0
        %852 = vmatmul.mubr.f32.gmra.mrb[0].mxu0 %v714
        %v853 = vpop.f32.mrb[0].mxu0
        %v854 = vadd.f32 %v671, %v853
        %v855 = vpop.f32.mrb[0].mxu0
        %856 = vmatprep.mubr.f32.mxu0 0.0
        %857 = vmatmul.mubr.f32.gmra.mrb[0].mxu0 %v717
        %v858 = vpop.f32.mrb[0].mxu0
        %v859 = vadd.f32 %v671, %v858
        %v860 = vpop.f32.mrb[0].mxu0
        %861 = vmatprep.mubr.f32.mxu0 0.0
        %862 = vmatmul.mubr.f32.gmra.mrb[0].mxu0 %v720
        %v863 = vpop.f32.mrb[0].mxu0
        %v864 = vadd.f32 %v671, %v863
        %v865 = vpop.f32.mrb[0].mxu0
        %866 = vdwg.mxu0
        %s867 = scalar_lea.vmem [#allocation6], %s334
        %vm868 = vcmask 130048
        %869 = vst.msk [vmem:[%s867] sm:$0xff] %vm868, %v789
        %870 = vst.msk [vmem:[%s867 + $0x8] sm:$0xff] %vm868, %v794
        %871 = vst.msk [vmem:[%s867 + $0x10] sm:$0xff] %vm868, %v799
        %872 = vst.msk [vmem:[%s867 + $0x18] sm:$0xff] %vm868, %v804
        %873 = vst.msk [vmem:[%s867 + $0x20] sm:$0xff] %vm868, %v809
        %874 = vst.msk [vmem:[%s867 + $0x28] sm:$0xff] %vm868, %v814
        %875 = vst.msk [vmem:[%s867 + $0x30] sm:$0xff] %vm868, %v819
        %876 = vst.msk [vmem:[%s867 + $0x38] sm:$0xff] %vm868, %v824
        %877 = vst.msk [vmem:[%s867 + $0x40] sm:$0xff] %vm868, %v829
        %878 = vst.msk [vmem:[%s867 + $0x48] sm:$0xff] %vm868, %v834
        %879 = vst.msk [vmem:[%s867 + $0x50] sm:$0xff] %vm868, %v839
        %880 = vst.msk [vmem:[%s867 + $0x58] sm:$0xff] %vm868, %v844
        %881 = vst.msk [vmem:[%s867 + $0x60] sm:$0xff] %vm868, %v849
        %882 = vst.msk [vmem:[%s867 + $0x68] sm:$0xff] %vm868, %v854
        %883 = vst.msk [vmem:[%s867 + $0x70] sm:$0xff] %vm868, %v859
        %884 = vst.msk [vmem:[%s867 + $0x78] sm:$0xff] %vm868, %v864
        %901 = vrot.lane.b32.xlu0 %v789, 112
        %v902 = vpop.permute.xlu0 %901
        %903 = vrot.lane.b32.xlu0 %v794, 112
        %v904 = vpop.permute.xlu0 %903
        %905 = vrot.lane.b32.xlu0 %v799, 112
        %v906 = vpop.permute.xlu0 %905
        %907 = vrot.lane.b32.xlu0 %v804, 112
        %v908 = vpop.permute.xlu0 %907
        %909 = vrot.lane.b32.xlu0 %v809, 112
        %v910 = vpop.permute.xlu0 %909
        %911 = vrot.lane.b32.xlu0 %v814, 112
        %v912 = vpop.permute.xlu0 %911
        %913 = vrot.lane.b32.xlu0 %v819, 112
        %v914 = vpop.permute.xlu0 %913
        %915 = vrot.lane.b32.xlu0 %v824, 112
        %v916 = vpop.permute.xlu0 %915
        %917 = vrot.lane.b32.xlu0 %v829, 112
        %v918 = vpop.permute.xlu0 %917
        %919 = vrot.lane.b32.xlu0 %v834, 112
        %v920 = vpop.permute.xlu0 %919
        %921 = vrot.lane.b32.xlu0 %v839, 112
        %v922 = vpop.permute.xlu0 %921
        %923 = vrot.lane.b32.xlu0 %v844, 112
        %v924 = vpop.permute.xlu0 %923
        %925 = vrot.lane.b32.xlu0 %v849, 112
        %v926 = vpop.permute.xlu0 %925
        %927 = vrot.lane.b32.xlu0 %v854, 112
        %v928 = vpop.permute.xlu0 %927
        %929 = vrot.lane.b32.xlu0 %v859, 112
        %v930 = vpop.permute.xlu0 %929
        %931 = vrot.lane.b32.xlu0 %v864, 112
        %v932 = vpop.permute.xlu0 %931
        %s949 = scalar_lea.vmem [#allocation7], %s334
        %950 = vst.msk [vmem:[%s949] sm:$0xff] %vm868, %v902
        %951 = vst.msk [vmem:[%s949 + $0x8] sm:$0xff] %vm868, %v904
        %952 = vst.msk [vmem:[%s949 + $0x10] sm:$0xff] %vm868, %v906
        %953 = vst.msk [vmem:[%s949 + $0x18] sm:$0xff] %vm868, %v908
        %954 = vst.msk [vmem:[%s949 + $0x20] sm:$0xff] %vm868, %v910
        %955 = vst.msk [vmem:[%s949 + $0x28] sm:$0xff] %vm868, %v912
        %956 = vst.msk [vmem:[%s949 + $0x30] sm:$0xff] %vm868, %v914
        %957 = vst.msk [vmem:[%s949 + $0x38] sm:$0xff] %vm868, %v916
        %958 = vst.msk [vmem:[%s949 + $0x40] sm:$0xff] %vm868, %v918
        %959 = vst.msk [vmem:[%s949 + $0x48] sm:$0xff] %vm868, %v920
        %960 = vst.msk [vmem:[%s949 + $0x50] sm:$0xff] %vm868, %v922
        %961 = vst.msk [vmem:[%s949 + $0x58] sm:$0xff] %vm868, %v924
        %962 = vst.msk [vmem:[%s949 + $0x60] sm:$0xff] %vm868, %v926
        %963 = vst.msk [vmem:[%s949 + $0x68] sm:$0xff] %vm868, %v928
        %964 = vst.msk [vmem:[%s949 + $0x70] sm:$0xff] %vm868, %v930
        %965 = vst.msk [vmem:[%s949 + $0x78] sm:$0xff] %vm868, %v932
      $region52: #{tpu_custom_call.1} parent=43 // pred_fallthru
        _
      %s966 = scalar_lea.vmem [#allocation6], %s334
      %v967 = vld [vmem:[%s966] sm:$0xff]
      %v968 = vld [vmem:[%s966 + $0x8] sm:$0xff]
      %v969 = vld [vmem:[%s966 + $0x10] sm:$0xff]
      %v970 = vld [vmem:[%s966 + $0x18] sm:$0xff]
      %v971 = vld [vmem:[%s966 + $0x20] sm:$0xff]
      %v972 = vld [vmem:[%s966 + $0x28] sm:$0xff]
      %v973 = vld [vmem:[%s966 + $0x30] sm:$0xff]
      %v974 = vld [vmem:[%s966 + $0x38] sm:$0xff]
      %v975 = vld [vmem:[%s966 + $0x40] sm:$0xff]
      %v976 = vld [vmem:[%s966 + $0x48] sm:$0xff]
      %v977 = vld [vmem:[%s966 + $0x50] sm:$0xff]
      %v978 = vld [vmem:[%s966 + $0x58] sm:$0xff]
      %v979 = vld [vmem:[%s966 + $0x60] sm:$0xff]
      %v980 = vld [vmem:[%s966 + $0x68] sm:$0xff]
      %v981 = vld [vmem:[%s966 + $0x70] sm:$0xff]
      %v982 = vld [vmem:[%s966 + $0x78] sm:$0xff]
      %s983 = scalar_lea.vmem [#allocation7], %s334
      %v984 = vld [vmem:[%s983] sm:$0xff]
      %v985 = vld [vmem:[%s983 + $0x8] sm:$0xff]
      %v986 = vld [vmem:[%s983 + $0x10] sm:$0xff]
      %v987 = vld [vmem:[%s983 + $0x18] sm:$0xff]
      %v988 = vld [vmem:[%s983 + $0x20] sm:$0xff]
      %v989 = vld [vmem:[%s983 + $0x28] sm:$0xff]
      %v990 = vld [vmem:[%s983 + $0x30] sm:$0xff]
      %v991 = vld [vmem:[%s983 + $0x38] sm:$0xff]
      %v992 = vld [vmem:[%s983 + $0x40] sm:$0xff]
      %v993 = vld [vmem:[%s983 + $0x48] sm:$0xff]
      %v994 = vld [vmem:[%s983 + $0x50] sm:$0xff]
      %v995 = vld [vmem:[%s983 + $0x58] sm:$0xff]
      %v996 = vld [vmem:[%s983 + $0x60] sm:$0xff]
      %v997 = vld [vmem:[%s983 + $0x68] sm:$0xff]
      %v998 = vld [vmem:[%s983 + $0x70] sm:$0xff]
      %v999 = vld [vmem:[%s983 + $0x78] sm:$0xff]
      %v1000 = vld [vmem:[#allocation2] sm:$0xff]
      %v1001 = vld [vmem:[#allocation2 + $0x8] sm:$0xff]
      %v1002 = vld [vmem:[#allocation2 + $0x10] sm:$0xff]
      %v1003 = vld [vmem:[#allocation2 + $0x18] sm:$0xff]
      %v1004 = vld [vmem:[#allocation2 + $0x20] sm:$0xff]
      %v1005 = vld [vmem:[#allocation2 + $0x28] sm:$0xff]
      %v1006 = vld [vmem:[#allocation2 + $0x30] sm:$0xff]
      %v1007 = vld [vmem:[#allocation2 + $0x38] sm:$0xff]
      %v1008 = vld [vmem:[#allocation2 + $0x40] sm:$0xff]
      %v1009 = vld [vmem:[#allocation2 + $0x48] sm:$0xff]
      %v1010 = vld [vmem:[#allocation2 + $0x50] sm:$0xff]
      %v1011 = vld [vmem:[#allocation2 + $0x58] sm:$0xff]
      %v1012 = vld [vmem:[#allocation2 + $0x60] sm:$0xff]
      %v1013 = vld [vmem:[#allocation2 + $0x68] sm:$0xff]
      %v1014 = vld [vmem:[#allocation2 + $0x70] sm:$0xff]
      %v1015 = vld [vmem:[#allocation2 + $0x78] sm:$0xff]
      %vm1016 = vcmask 130048
      %v1018 = vsel %vm1016, %v1000, 0
      %v1021 = vsel %vm1016, %v1001, 0
      %v1024 = vsel %vm1016, %v1002, 0
      %v1027 = vsel %vm1016, %v1003, 0
      %v1030 = vsel %vm1016, %v1004, 0
      %v1033 = vsel %vm1016, %v1005, 0
      %v1036 = vsel %vm1016, %v1006, 0
      %v1039 = vsel %vm1016, %v1007, 0
      %v1042 = vsel %vm1016, %v1008, 0
      %v1045 = vsel %vm1016, %v1009, 0
      %v1048 = vsel %vm1016, %v1010, 0
      %v1051 = vsel %vm1016, %v1011, 0
      %v1054 = vsel %vm1016, %v1012, 0
      %v1057 = vsel %vm1016, %v1013, 0
      %v1060 = vsel %vm1016, %v1014, 0
      %v1063 = vsel %vm1016, %v1015, 0
      %v1066 = vsel %vm1016, %v967, 0
      %v1069 = vsel %vm1016, %v968, 0
      %v1072 = vsel %vm1016, %v969, 0
      %v1075 = vsel %vm1016, %v970, 0
      %v1078 = vsel %vm1016, %v971, 0
      %v1081 = vsel %vm1016, %v972, 0
      %v1084 = vsel %vm1016, %v973, 0
      %v1087 = vsel %vm1016, %v974, 0
      %v1090 = vsel %vm1016, %v975, 0
      %v1093 = vsel %vm1016, %v976, 0
      %v1096 = vsel %vm1016, %v977, 0
      %v1099 = vsel %vm1016, %v978, 0
      %v1102 = vsel %vm1016, %v979, 0
      %v1105 = vsel %vm1016, %v980, 0
      %v1108 = vsel %vm1016, %v981, 0
      %v1111 = vsel %vm1016, %v982, 0
      %1113 = vmatprep.subr.mxu0 0.0
      %1114 = vmatpush1.xpose.msra.mxu0 %v1066
      %1115 = vmatprep.subr.mxu0 0.0
      %1116 = vmatpush1.xpose.msra.mxu0 %v1069
      %1117 = vmatprep.subr.mxu0 0.0
      %1118 = vmatpush1.xpose.msra.mxu0 %v1072
      %1119 = vmatprep.subr.mxu0 0.0
      %1120 = vmatpush1.xpose.msra.mxu0 %v1075
      %1121 = vmatprep.subr.mxu0 0.0
      %1122 = vmatpush1.xpose.msra.mxu0 %v1078
      %1123 = vmatprep.subr.mxu0 0.0
      %1124 = vmatpush1.xpose.msra.mxu0 %v1081
      %1125 = vmatprep.subr.mxu0 0.0
      %1126 = vmatpush1.xpose.msra.mxu0 %v1084
      %1127 = vmatprep.subr.mxu0 0.0
      %1128 = vmatpush1.xpose.msra.mxu0 %v1087
      %1129 = vmatprep.subr.mxu0 0.0
      %1130 = vmatpush1.xpose.msra.mxu0 %v1090
      %1131 = vmatprep.subr.mxu0 0.0
      %1132 = vmatpush1.xpose.msra.mxu0 %v1093
      %1133 = vmatprep.subr.mxu0 0.0
      %1134 = vmatpush1.xpose.msra.mxu0 %v1096
      %1135 = vmatprep.subr.mxu0 0.0
      %1136 = vmatpush1.xpose.msra.mxu0 %v1099
      %1137 = vmatprep.subr.mxu0 0.0
      %1138 = vmatpush1.xpose.msra.mxu0 %v1102
      %1139 = vmatprep.subr.mxu0 0.0
      %1140 = vmatpush1.xpose.msra.mxu0 %v1105
      %1141 = vmatprep.subr.mxu0 0.0
      %1142 = vmatpush1.xpose.msra.mxu0 %v1108
      %1143 = vmatprep.subr.mxu0 0.0
      %1144 = vmatpush1.xpose.msra.mxu0 %v1111
      %1145 = vmatprep.subr.mxu0 0.0
      %1146 = vmatpush1.xpose.msra.mxu0 0.0
      %1147 = vmatprep.subr.mxu0 0.0
      %1148 = vmatpush1.xpose.msra.mxu0 0.0
      %1149 = vmatprep.subr.mxu0 0.0
      %1150 = vmatpush1.xpose.msra.mxu0 0.0
      %1151 = vmatprep.subr.mxu0 0.0
      %1152 = vmatpush1.xpose.msra.mxu0 0.0
      %1153 = vmatprep.subr.mxu0 0.0
      %1154 = vmatpush1.xpose.msra.mxu0 0.0
      %1155 = vmatprep.subr.mxu0 0.0
      %1156 = vmatpush1.xpose.msra.mxu0 0.0
      %1157 = vmatprep.subr.mxu0 0.0
      %1158 = vmatpush1.xpose.msra.mxu0 0.0
      %1159 = vmatprep.subr.mxu0 0.0
      %1160 = vmatpush1.xpose.msra.mxu0 0.0
      %1161 = vmatprep.subr.mxu0 0.0
      %1162 = vmatpush1.xpose.msra.mxu0 0.0
      %1163 = vmatprep.subr.mxu0 0.0
      %1164 = vmatpush1.xpose.msra.mxu0 0.0
      %1165 = vmatprep.subr.mxu0 0.0
      %1166 = vmatpush1.xpose.msra.mxu0 0.0
      %1167 = vmatprep.subr.mxu0 0.0
      %1168 = vmatpush1.xpose.msra.mxu0 0.0
      %1169 = vmatprep.subr.mxu0 0.0
      %1170 = vmatpush1.xpose.msra.mxu0 0.0
      %1171 = vmatprep.subr.mxu0 0.0
      %1172 = vmatpush1.xpose.msra.mxu0 0.0
      %1173 = vmatprep.subr.mxu0 0.0
      %1174 = vmatpush1.xpose.msra.mxu0 0.0
      %1175 = vmatprep.subr.mxu0 0.0
      %1176 = vmatpush1.xpose.msra.mxu0 0.0
      %1177 = vmatprep.mubr.f32.mxu0 0.0
      %1178 = vmatmul.mubr.f32.gmra.mrb[0].mxu0 %v1018
      %v1179 = vpop.f32.mrb[0].mxu0
      %v1180 = vadd.f32 0.0, %v1179
      %v1181 = vpop.f32.mrb[0].mxu0
      %1182 = vmatprep.mubr.f32.mxu0 0.0
      %1183 = vmatmul.mubr.f32.gmra.mrb[0].mxu0 %v1021
      %v1184 = vpop.f32.mrb[0].mxu0
      %v1185 = vadd.f32 0.0, %v1184
      %v1186 = vpop.f32.mrb[0].mxu0
      %1187 = vmatprep.mubr.f32.mxu0 0.0
      %1188 = vmatmul.mubr.f32.gmra.mrb[0].mxu0 %v1024
      %v1189 = vpop.f32.mrb[0].mxu0
      %v1190 = vadd.f32 0.0, %v1189
      %v1191 = vpop.f32.mrb[0].mxu0
      %1192 = vmatprep.mubr.f32.mxu0 0.0
      %1193 = vmatmul.mubr.f32.gmra.mrb[0].mxu0 %v1027
      %v1194 = vpop.f32.mrb[0].mxu0
      %v1195 = vadd.f32 0.0, %v1194
      %v1196 = vpop.f32.mrb[0].mxu0
      %1197 = vmatprep.mubr.f32.mxu0 0.0
      %1198 = vmatmul.mubr.f32.gmra.mrb[0].mxu0 %v1030
      %v1199 = vpop.f32.mrb[0].mxu0
      %v1200 = vadd.f32 0.0, %v1199
      %v1201 = vpop.f32.mrb[0].mxu0
      %1202 = vmatprep.mubr.f32.mxu0 0.0
      %1203 = vmatmul.mubr.f32.gmra.mrb[0].mxu0 %v1033
      %v1204 = vpop.f32.mrb[0].mxu0
      %v1205 = vadd.f32 0.0, %v1204
      %v1206 = vpop.f32.mrb[0].mxu0
      %1207 = vmatprep.mubr.f32.mxu0 0.0
      %1208 = vmatmul.mubr.f32.gmra.mrb[0].mxu0 %v1036
      %v1209 = vpop.f32.mrb[0].mxu0
      %v1210 = vadd.f32 0.0, %v1209
      %v1211 = vpop.f32.mrb[0].mxu0
      %1212 = vmatprep.mubr.f32.mxu0 0.0
      %1213 = vmatmul.mubr.f32.gmra.mrb[0].mxu0 %v1039
      %v1214 = vpop.f32.mrb[0].mxu0
      %v1215 = vadd.f32 0.0, %v1214
      %v1216 = vpop.f32.mrb[0].mxu0
      %1217 = vmatprep.mubr.f32.mxu0 0.0
      %1218 = vmatmul.mubr.f32.gmra.mrb[0].mxu0 %v1042
      %v1219 = vpop.f32.mrb[0].mxu0
      %v1220 = vadd.f32 0.0, %v1219
      %v1221 = vpop.f32.mrb[0].mxu0
      %1222 = vmatprep.mubr.f32.mxu0 0.0
      %1223 = vmatmul.mubr.f32.gmra.mrb[0].mxu0 %v1045
      %v1224 = vpop.f32.mrb[0].mxu0
      %v1225 = vadd.f32 0.0, %v1224
      %v1226 = vpop.f32.mrb[0].mxu0
      %1227 = vmatprep.mubr.f32.mxu0 0.0
      %1228 = vmatmul.mubr.f32.gmra.mrb[0].mxu0 %v1048
      %v1229 = vpop.f32.mrb[0].mxu0
      %v1230 = vadd.f32 0.0, %v1229
      %v1231 = vpop.f32.mrb[0].mxu0
      %1232 = vmatprep.mubr.f32.mxu0 0.0
      %1233 = vmatmul.mubr.f32.gmra.mrb[0].mxu0 %v1051
      %v1234 = vpop.f32.mrb[0].mxu0
      %v1235 = vadd.f32 0.0, %v1234
      %v1236 = vpop.f32.mrb[0].mxu0
      %1237 = vmatprep.mubr.f32.mxu0 0.0
      %1238 = vmatmul.mubr.f32.gmra.mrb[0].mxu0 %v1054
      %v1239 = vpop.f32.mrb[0].mxu0
      %v1240 = vadd.f32 0.0, %v1239
      %v1241 = vpop.f32.mrb[0].mxu0
      %1242 = vmatprep.mubr.f32.mxu0 0.0
      %1243 = vmatmul.mubr.f32.gmra.mrb[0].mxu0 %v1057
      %v1244 = vpop.f32.mrb[0].mxu0
      %v1245 = vadd.f32 0.0, %v1244
      %v1246 = vpop.f32.mrb[0].mxu0
      %1247 = vmatprep.mubr.f32.mxu0 0.0
      %1248 = vmatmul.mubr.f32.gmra.mrb[0].mxu0 %v1060
      %v1249 = vpop.f32.mrb[0].mxu0
      %v1250 = vadd.f32 0.0, %v1249
      %v1251 = vpop.f32.mrb[0].mxu0
      %1252 = vmatprep.mubr.f32.mxu0 0.0
      %1253 = vmatmul.mubr.f32.gmra.mrb[0].mxu0 %v1063
      %v1254 = vpop.f32.mrb[0].mxu0
      %v1255 = vadd.f32 0.0, %v1254
      %v1256 = vpop.f32.mrb[0].mxu0
      %1257 = vdwg.mxu0
      %v1258 = vld [vmem:[#allocation3] sm:$0xff]
      %v1259 = vld [vmem:[#allocation3 + $0x8] sm:$0xff]
      %v1260 = vld [vmem:[#allocation3 + $0x10] sm:$0xff]
      %v1261 = vld [vmem:[#allocation3 + $0x18] sm:$0xff]
      %v1262 = vld [vmem:[#allocation3 + $0x20] sm:$0xff]
      %v1263 = vld [vmem:[#allocation3 + $0x28] sm:$0xff]
      %v1264 = vld [vmem:[#allocation3 + $0x30] sm:$0xff]
      %v1265 = vld [vmem:[#allocation3 + $0x38] sm:$0xff]
      %v1266 = vld [vmem:[#allocation3 + $0x40] sm:$0xff]
      %v1267 = vld [vmem:[#allocation3 + $0x48] sm:$0xff]
      %v1268 = vld [vmem:[#allocation3 + $0x50] sm:$0xff]
      %v1269 = vld [vmem:[#allocation3 + $0x58] sm:$0xff]
      %v1270 = vld [vmem:[#allocation3 + $0x60] sm:$0xff]
      %v1271 = vld [vmem:[#allocation3 + $0x68] sm:$0xff]
      %v1272 = vld [vmem:[#allocation3 + $0x70] sm:$0xff]
      %v1273 = vld [vmem:[#allocation3 + $0x78] sm:$0xff]
      %1274 = vmax.xlane.f32.xlu0 %v1180
      %v1275 = vpop.xlane.xlu0 %1274
      %1276 = vmax.xlane.f32.xlu0 %v1185
      %v1277 = vpop.xlane.xlu0 %1276
      %1278 = vmax.xlane.f32.xlu0 %v1190
      %v1279 = vpop.xlane.xlu0 %1278
      %1280 = vmax.xlane.f32.xlu0 %v1195
      %v1281 = vpop.xlane.xlu0 %1280
      %1282 = vmax.xlane.f32.xlu0 %v1200
      %v1283 = vpop.xlane.xlu0 %1282
      %1284 = vmax.xlane.f32.xlu0 %v1205
      %v1285 = vpop.xlane.xlu0 %1284
      %1286 = vmax.xlane.f32.xlu0 %v1210
      %v1287 = vpop.xlane.xlu0 %1286
      %1288 = vmax.xlane.f32.xlu0 %v1215
      %v1289 = vpop.xlane.xlu0 %1288
      %1290 = vmax.xlane.f32.xlu0 %v1220
      %v1291 = vpop.xlane.xlu0 %1290
      %1292 = vmax.xlane.f32.xlu0 %v1225
      %v1293 = vpop.xlane.xlu0 %1292
      %1294 = vmax.xlane.f32.xlu0 %v1230
      %v1295 = vpop.xlane.xlu0 %1294
      %1296 = vmax.xlane.f32.xlu0 %v1235
      %v1297 = vpop.xlane.xlu0 %1296
      %1298 = vmax.xlane.f32.xlu0 %v1240
      %v1299 = vpop.xlane.xlu0 %1298
      %1300 = vmax.xlane.f32.xlu0 %v1245
      %v1301 = vpop.xlane.xlu0 %1300
      %1302 = vmax.xlane.f32.xlu0 %v1250
      %v1303 = vpop.xlane.xlu0 %1302
      %1304 = vmax.xlane.f32.xlu0 %v1255
      %v1305 = vpop.xlane.xlu0 %1304
      %v1306 = vmax.f32 %v1258, %v1275
      %v1307 = vmax.f32 %v1259, %v1277
      %v1308 = vmax.f32 %v1260, %v1279
      %v1309 = vmax.f32 %v1261, %v1281
      %v1310 = vmax.f32 %v1262, %v1283
      %v1311 = vmax.f32 %v1263, %v1285
      %v1312 = vmax.f32 %v1264, %v1287
      %v1313 = vmax.f32 %v1265, %v1289
      %v1314 = vmax.f32 %v1266, %v1291
      %v1315 = vmax.f32 %v1267, %v1293
      %v1316 = vmax.f32 %v1268, %v1295
      %v1317 = vmax.f32 %v1269, %v1297
      %v1318 = vmax.f32 %v1270, %v1299
      %v1319 = vmax.f32 %v1271, %v1301
      %v1320 = vmax.f32 %v1272, %v1303
      %v1321 = vmax.f32 %v1273, %v1305
      %v1322 = vsub.f32 %v1258, %v1306
      %v1323 = vsub.f32 %v1259, %v1307
      %v1324 = vsub.f32 %v1260, %v1308
      %v1325 = vsub.f32 %v1261, %v1309
      %v1326 = vsub.f32 %v1262, %v1310
      %v1327 = vsub.f32 %v1263, %v1311
      %v1328 = vsub.f32 %v1264, %v1312
      %v1329 = vsub.f32 %v1265, %v1313
      %v1330 = vsub.f32 %v1266, %v1314
      %v1331 = vsub.f32 %v1267, %v1315
      %v1332 = vsub.f32 %v1268, %v1316
      %v1333 = vsub.f32 %v1269, %v1317
      %v1334 = vsub.f32 %v1270, %v1318
      %v1335 = vsub.f32 %v1271, %v1319
      %v1336 = vsub.f32 %v1272, %v1320
      %v1337 = vsub.f32 %v1273, %v1321
      %v1338 = vmul.f32 %v1322, 1.442695
      %v1339 = vpow.pop %v1338
      %v1340 = vmul.f32 %v1323, 1.442695
      %v1341 = vpow.pop %v1340
      %v1342 = vmul.f32 %v1324, 1.442695
      %v1343 = vpow.pop %v1342
      %v1344 = vmul.f32 %v1325, 1.442695
      %v1345 = vpow.pop %v1344
      %v1346 = vmul.f32 %v1326, 1.442695
      %v1347 = vpow.pop %v1346
      %v1348 = vmul.f32 %v1327, 1.442695
      %v1349 = vpow.pop %v1348
      %v1350 = vmul.f32 %v1328, 1.442695
      %v1351 = vpow.pop %v1350
      %v1352 = vmul.f32 %v1329, 1.442695
      %v1353 = vpow.pop %v1352
      %v1354 = vmul.f32 %v1330, 1.442695
      %v1355 = vpow.pop %v1354
      %v1356 = vmul.f32 %v1331, 1.442695
      %v1357 = vpow.pop %v1356
      %v1358 = vmul.f32 %v1332, 1.442695
      %v1359 = vpow.pop %v1358
      %v1360 = vmul.f32 %v1333, 1.442695
      %v1361 = vpow.pop %v1360
      %v1362 = vmul.f32 %v1334, 1.442695
      %v1363 = vpow.pop %v1362
      %v1364 = vmul.f32 %v1335, 1.442695
      %v1365 = vpow.pop %v1364
      %v1366 = vmul.f32 %v1336, 1.442695
      %v1367 = vpow.pop %v1366
      %v1368 = vmul.f32 %v1337, 1.442695
      %v1369 = vpow.pop %v1368
      %1371 = vset.pattern.permute.xlu0 0
      %1372 = vperm.xlu0 %1371, %v1306
      %v1373 = vpop.permute.xlu0 %1372
      %1376 = vset.pattern.permute.xlu0 0
      %1377 = vperm.xlu0 %1376, %v1307
      %v1378 = vpop.permute.xlu0 %1377
      %1381 = vset.pattern.permute.xlu0 0
      %1382 = vperm.xlu0 %1381, %v1308
      %v1383 = vpop.permute.xlu0 %1382
      %1386 = vset.pattern.permute.xlu0 0
      %1387 = vperm.xlu0 %1386, %v1309
      %v1388 = vpop.permute.xlu0 %1387
      %1391 = vset.pattern.permute.xlu0 0
      %1392 = vperm.xlu0 %1391, %v1310
      %v1393 = vpop.permute.xlu0 %1392
      %1396 = vset.pattern.permute.xlu0 0
      %1397 = vperm.xlu0 %1396, %v1311
      %v1398 = vpop.permute.xlu0 %1397
      %1401 = vset.pattern.permute.xlu0 0
      %1402 = vperm.xlu0 %1401, %v1312
      %v1403 = vpop.permute.xlu0 %1402
      %1406 = vset.pattern.permute.xlu0 0
      %1407 = vperm.xlu0 %1406, %v1313
      %v1408 = vpop.permute.xlu0 %1407
      %1411 = vset.pattern.permute.xlu0 0
      %1412 = vperm.xlu0 %1411, %v1314
      %v1413 = vpop.permute.xlu0 %1412
      %1416 = vset.pattern.permute.xlu0 0
      %1417 = vperm.xlu0 %1416, %v1315
      %v1418 = vpop.permute.xlu0 %1417
      %1421 = vset.pattern.permute.xlu0 0
      %1422 = vperm.xlu0 %1421, %v1316
      %v1423 = vpop.permute.xlu0 %1422
      %1426 = vset.pattern.permute.xlu0 0
      %1427 = vperm.xlu0 %1426, %v1317
      %v1428 = vpop.permute.xlu0 %1427
      %1431 = vset.pattern.permute.xlu0 0
      %1432 = vperm.xlu0 %1431, %v1318
      %v1433 = vpop.permute.xlu0 %1432
      %1436 = vset.pattern.permute.xlu0 0
      %1437 = vperm.xlu0 %1436, %v1319
      %v1438 = vpop.permute.xlu0 %1437
      %1441 = vset.pattern.permute.xlu0 0
      %1442 = vperm.xlu0 %1441, %v1320
      %v1443 = vpop.permute.xlu0 %1442
      %1446 = vset.pattern.permute.xlu0 0
      %1447 = vperm.xlu0 %1446, %v1321
      %v1448 = vpop.permute.xlu0 %1447
      %v1450 = vsub.f32 %v1180, %v1373
      %v1451 = vsub.f32 %v1185, %v1378
      %v1452 = vsub.f32 %v1190, %v1383
      %v1453 = vsub.f32 %v1195, %v1388
      %v1454 = vsub.f32 %v1200, %v1393
      %v1455 = vsub.f32 %v1205, %v1398
      %v1456 = vsub.f32 %v1210, %v1403
      %v1457 = vsub.f32 %v1215, %v1408
      %v1458 = vsub.f32 %v1220, %v1413
      %v1459 = vsub.f32 %v1225, %v1418
      %v1460 = vsub.f32 %v1230, %v1423
      %v1461 = vsub.f32 %v1235, %v1428
      %v1462 = vsub.f32 %v1240, %v1433
      %v1463 = vsub.f32 %v1245, %v1438
      %v1464 = vsub.f32 %v1250, %v1443
      %v1465 = vsub.f32 %v1255, %v1448
      %v1466 = vmul.f32 %v1450, 1.442695
      %v1467 = vpow.pop %v1466
      %v1468 = vmul.f32 %v1451, 1.442695
      %v1469 = vpow.pop %v1468
      %v1470 = vmul.f32 %v1452, 1.442695
      %v1471 = vpow.pop %v1470
      %v1472 = vmul.f32 %v1453, 1.442695
      %v1473 = vpow.pop %v1472
      %v1474 = vmul.f32 %v1454, 1.442695
      %v1475 = vpow.pop %v1474
      %v1476 = vmul.f32 %v1455, 1.442695
      %v1477 = vpow.pop %v1476
      %v1478 = vmul.f32 %v1456, 1.442695
      %v1479 = vpow.pop %v1478
      %v1480 = vmul.f32 %v1457, 1.442695
      %v1481 = vpow.pop %v1480
      %v1482 = vmul.f32 %v1458, 1.442695
      %v1483 = vpow.pop %v1482
      %v1484 = vmul.f32 %v1459, 1.442695
      %v1485 = vpow.pop %v1484
      %v1486 = vmul.f32 %v1460, 1.442695
      %v1487 = vpow.pop %v1486
      %v1488 = vmul.f32 %v1461, 1.442695
      %v1489 = vpow.pop %v1488
      %v1490 = vmul.f32 %v1462, 1.442695
      %v1491 = vpow.pop %v1490
      %v1492 = vmul.f32 %v1463, 1.442695
      %v1493 = vpow.pop %v1492
      %v1494 = vmul.f32 %v1464, 1.442695
      %v1495 = vpow.pop %v1494
      %v1496 = vmul.f32 %v1465, 1.442695
      %v1497 = vpow.pop %v1496
      %v1498 = vld [vmem:[#allocation4] sm:$0xff]
      %v1499 = vld [vmem:[#allocation4 + $0x8] sm:$0xff]
      %v1500 = vld [vmem:[#allocation4 + $0x10] sm:$0xff]
      %v1501 = vld [vmem:[#allocation4 + $0x18] sm:$0xff]
      %v1502 = vld [vmem:[#allocation4 + $0x20] sm:$0xff]
      %v1503 = vld [vmem:[#allocation4 + $0x28] sm:$0xff]
      %v1504 = vld [vmem:[#allocation4 + $0x30] sm:$0xff]
      %v1505 = vld [vmem:[#allocation4 + $0x38] sm:$0xff]
      %v1506 = vld [vmem:[#allocation4 + $0x40] sm:$0xff]
      %v1507 = vld [vmem:[#allocation4 + $0x48] sm:$0xff]
      %v1508 = vld [vmem:[#allocation4 + $0x50] sm:$0xff]
      %v1509 = vld [vmem:[#allocation4 + $0x58] sm:$0xff]
      %v1510 = vld [vmem:[#allocation4 + $0x60] sm:$0xff]
      %v1511 = vld [vmem:[#allocation4 + $0x68] sm:$0xff]
      %v1512 = vld [vmem:[#allocation4 + $0x70] sm:$0xff]
      %v1513 = vld [vmem:[#allocation4 + $0x78] sm:$0xff]
      %v1514 = vmul.f32 %v1339, %v1498
      %v1515 = vmul.f32 %v1341, %v1499
      %v1516 = vmul.f32 %v1343, %v1500
      %v1517 = vmul.f32 %v1345, %v1501
      %v1518 = vmul.f32 %v1347, %v1502
      %v1519 = vmul.f32 %v1349, %v1503
      %v1520 = vmul.f32 %v1351, %v1504
      %v1521 = vmul.f32 %v1353, %v1505
      %v1522 = vmul.f32 %v1355, %v1506
      %v1523 = vmul.f32 %v1357, %v1507
      %v1524 = vmul.f32 %v1359, %v1508
      %v1525 = vmul.f32 %v1361, %v1509
      %v1526 = vmul.f32 %v1363, %v1510
      %v1527 = vmul.f32 %v1365, %v1511
      %v1528 = vmul.f32 %v1367, %v1512
      %v1529 = vmul.f32 %v1369, %v1513
      %1530 = vadd.xlane.f32.xlu0 %v1467
      %v1531 = vpop.xlane.xlu0 %1530
      %1532 = vadd.xlane.f32.xlu0 %v1469
      %v1533 = vpop.xlane.xlu0 %1532
      %1534 = vadd.xlane.f32.xlu0 %v1471
      %v1535 = vpop.xlane.xlu0 %1534
      %1536 = vadd.xlane.f32.xlu0 %v1473
      %v1537 = vpop.xlane.xlu0 %1536
      %1538 = vadd.xlane.f32.xlu0 %v1475
      %v1539 = vpop.xlane.xlu0 %1538
      %1540 = vadd.xlane.f32.xlu0 %v1477
      %v1541 = vpop.xlane.xlu0 %1540
      %1542 = vadd.xlane.f32.xlu0 %v1479
      %v1543 = vpop.xlane.xlu0 %1542
      %1544 = vadd.xlane.f32.xlu0 %v1481
      %v1545 = vpop.xlane.xlu0 %1544
      %1546 = vadd.xlane.f32.xlu0 %v1483
      %v1547 = vpop.xlane.xlu0 %1546
      %1548 = vadd.xlane.f32.xlu0 %v1485
      %v1549 = vpop.xlane.xlu0 %1548
      %1550 = vadd.xlane.f32.xlu0 %v1487
      %v1551 = vpop.xlane.xlu0 %1550
      %1552 = vadd.xlane.f32.xlu0 %v1489
      %v1553 = vpop.xlane.xlu0 %1552
      %1554 = vadd.xlane.f32.xlu0 %v1491
      %v1555 = vpop.xlane.xlu0 %1554
      %1556 = vadd.xlane.f32.xlu0 %v1493
      %v1557 = vpop.xlane.xlu0 %1556
      %1558 = vadd.xlane.f32.xlu0 %v1495
      %v1559 = vpop.xlane.xlu0 %1558
      %1560 = vadd.xlane.f32.xlu0 %v1497
      %v1561 = vpop.xlane.xlu0 %1560
      %v1562 = vadd.f32 %v1514, %v1531
      %v1563 = vadd.f32 %v1515, %v1533
      %v1564 = vadd.f32 %v1516, %v1535
      %v1565 = vadd.f32 %v1517, %v1537
      %v1566 = vadd.f32 %v1518, %v1539
      %v1567 = vadd.f32 %v1519, %v1541
      %v1568 = vadd.f32 %v1520, %v1543
      %v1569 = vadd.f32 %v1521, %v1545
      %v1570 = vadd.f32 %v1522, %v1547
      %v1571 = vadd.f32 %v1523, %v1549
      %v1572 = vadd.f32 %v1524, %v1551
      %v1573 = vadd.f32 %v1525, %v1553
      %v1574 = vadd.f32 %v1526, %v1555
      %v1575 = vadd.f32 %v1527, %v1557
      %v1576 = vadd.f32 %v1528, %v1559
      %v1577 = vadd.f32 %v1529, %v1561
      %vm1578 = vcmask 7168
      %1579 = vst.msk [vmem:[#allocation4] sm:$0xff] %vm1578, %v1562
      %1580 = vst.msk [vmem:[#allocation4 + $0x8] sm:$0xff] %vm1578, %v1563
      %1581 = vst.msk [vmem:[#allocation4 + $0x10] sm:$0xff] %vm1578, %v1564
      %1582 = vst.msk [vmem:[#allocation4 + $0x18] sm:$0xff] %vm1578, %v1565
      %1583 = vst.msk [vmem:[#allocation4 + $0x20] sm:$0xff] %vm1578, %v1566
      %1584 = vst.msk [vmem:[#allocation4 + $0x28] sm:$0xff] %vm1578, %v1567
      %1585 = vst.msk [vmem:[#allocation4 + $0x30] sm:$0xff] %vm1578, %v1568
      %1586 = vst.msk [vmem:[#allocation4 + $0x38] sm:$0xff] %vm1578, %v1569
      %1587 = vst.msk [vmem:[#allocation4 + $0x40] sm:$0xff] %vm1578, %v1570
      %1588 = vst.msk [vmem:[#allocation4 + $0x48] sm:$0xff] %vm1578, %v1571
      %1589 = vst.msk [vmem:[#allocation4 + $0x50] sm:$0xff] %vm1578, %v1572
      %1590 = vst.msk [vmem:[#allocation4 + $0x58] sm:$0xff] %vm1578, %v1573
      %1591 = vst.msk [vmem:[#allocation4 + $0x60] sm:$0xff] %vm1578, %v1574
      %1592 = vst.msk [vmem:[#allocation4 + $0x68] sm:$0xff] %vm1578, %v1575
      %1593 = vst.msk [vmem:[#allocation4 + $0x70] sm:$0xff] %vm1578, %v1576
      %1594 = vst.msk [vmem:[#allocation4 + $0x78] sm:$0xff] %vm1578, %v1577
      %v1595 = vld [vmem:[#allocation5] sm:$0xff]
      %v1596 = vld [vmem:[#allocation5 + $0x8] sm:$0xff]
      %v1597 = vld [vmem:[#allocation5 + $0x10] sm:$0xff]
      %v1598 = vld [vmem:[#allocation5 + $0x18] sm:$0xff]
      %v1599 = vld [vmem:[#allocation5 + $0x20] sm:$0xff]
      %v1600 = vld [vmem:[#allocation5 + $0x28] sm:$0xff]
      %v1601 = vld [vmem:[#allocation5 + $0x30] sm:$0xff]
      %v1602 = vld [vmem:[#allocation5 + $0x38] sm:$0xff]
      %v1603 = vld [vmem:[#allocation5 + $0x40] sm:$0xff]
      %v1604 = vld [vmem:[#allocation5 + $0x48] sm:$0xff]
      %v1605 = vld [vmem:[#allocation5 + $0x50] sm:$0xff]
      %v1606 = vld [vmem:[#allocation5 + $0x58] sm:$0xff]
      %v1607 = vld [vmem:[#allocation5 + $0x60] sm:$0xff]
      %v1608 = vld [vmem:[#allocation5 + $0x68] sm:$0xff]
      %v1609 = vld [vmem:[#allocation5 + $0x70] sm:$0xff]
      %v1610 = vld [vmem:[#allocation5 + $0x78] sm:$0xff]
      %1612 = vset.pattern.permute.xlu0 0
      %1613 = vperm.xlu0 %1612, %v1339
      %v1614 = vpop.permute.xlu0 %1613
      %1617 = vset.pattern.permute.xlu0 0
      %1618 = vperm.xlu0 %1617, %v1341
      %v1619 = vpop.permute.xlu0 %1618
      %1622 = vset.pattern.permute.xlu0 0
      %1623 = vperm.xlu0 %1622, %v1343
      %v1624 = vpop.permute.xlu0 %1623
      %1627 = vset.pattern.permute.xlu0 0
      %1628 = vperm.xlu0 %1627, %v1345
      %v1629 = vpop.permute.xlu0 %1628
      %1632 = vset.pattern.permute.xlu0 0
      %1633 = vperm.xlu0 %1632, %v1347
      %v1634 = vpop.permute.xlu0 %1633
      %1637 = vset.pattern.permute.xlu0 0
      %1638 = vperm.xlu0 %1637, %v1349
      %v1639 = vpop.permute.xlu0 %1638
      %1642 = vset.pattern.permute.xlu0 0
      %1643 = vperm.xlu0 %1642, %v1351
      %v1644 = vpop.permute.xlu0 %1643
      %1647 = vset.pattern.permute.xlu0 0
      %1648 = vperm.xlu0 %1647, %v1353
      %v1649 = vpop.permute.xlu0 %1648
      %1652 = vset.pattern.permute.xlu0 0
      %1653 = vperm.xlu0 %1652, %v1355
      %v1654 = vpop.permute.xlu0 %1653
      %1657 = vset.pattern.permute.xlu0 0
      %1658 = vperm.xlu0 %1657, %v1357
      %v1659 = vpop.permute.xlu0 %1658
      %1662 = vset.pattern.permute.xlu0 0
      %1663 = vperm.xlu0 %1662, %v1359
      %v1664 = vpop.permute.xlu0 %1663
      %1667 = vset.pattern.permute.xlu0 0
      %1668 = vperm.xlu0 %1667, %v1361
      %v1669 = vpop.permute.xlu0 %1668
      %1672 = vset.pattern.permute.xlu0 0
      %1673 = vperm.xlu0 %1672, %v1363
      %v1674 = vpop.permute.xlu0 %1673
      %1677 = vset.pattern.permute.xlu0 0
      %1678 = vperm.xlu0 %1677, %v1365
      %v1679 = vpop.permute.xlu0 %1678
      %1682 = vset.pattern.permute.xlu0 0
      %1683 = vperm.xlu0 %1682, %v1367
      %v1684 = vpop.permute.xlu0 %1683
      %1687 = vset.pattern.permute.xlu0 0
      %1688 = vperm.xlu0 %1687, %v1369
      %v1689 = vpop.permute.xlu0 %1688
      %v1691 = vmul.f32 %v1614, %v1595
      %v1692 = vmul.f32 %v1619, %v1596
      %v1693 = vmul.f32 %v1624, %v1597
      %v1694 = vmul.f32 %v1629, %v1598
      %v1695 = vmul.f32 %v1634, %v1599
      %v1696 = vmul.f32 %v1639, %v1600
      %v1697 = vmul.f32 %v1644, %v1601
      %v1698 = vmul.f32 %v1649, %v1602
      %v1699 = vmul.f32 %v1654, %v1603
      %v1700 = vmul.f32 %v1659, %v1604
      %v1701 = vmul.f32 %v1664, %v1605
      %v1702 = vmul.f32 %v1669, %v1606
      %v1703 = vmul.f32 %v1674, %v1607
      %v1704 = vmul.f32 %v1679, %v1608
      %v1705 = vmul.f32 %v1684, %v1609
      %v1706 = vmul.f32 %v1689, %v1610
      %1707 = vmatprep.subr.mxu0 0.0
      %1708 = vmatpush1.msra.mxu0 %v984
      %1709 = vmatprep.subr.mxu0 0.0
      %1710 = vmatpush1.msra.mxu0 %v985
      %1711 = vmatprep.subr.mxu0 0.0
      %1712 = vmatpush1.msra.mxu0 %v986
      %1713 = vmatprep.subr.mxu0 0.0
      %1714 = vmatpush1.msra.mxu0 %v987
      %1715 = vmatprep.subr.mxu0 0.0
      %1716 = vmatpush1.msra.mxu0 %v988
      %1717 = vmatprep.subr.mxu0 0.0
      %1718 = vmatpush1.msra.mxu0 %v989
      %1719 = vmatprep.subr.mxu0 0.0
      %1720 = vmatpush1.msra.mxu0 %v990
      %1721 = vmatprep.subr.mxu0 0.0
      %1722 = vmatpush1.msra.mxu0 %v991
      %1723 = vmatprep.subr.mxu0 0.0
      %1724 = vmatpush1.msra.mxu0 %v992
      %1725 = vmatprep.subr.mxu0 0.0
      %1726 = vmatpush1.msra.mxu0 %v993
      %1727 = vmatprep.subr.mxu0 0.0
      %1728 = vmatpush1.msra.mxu0 %v994
      %1729 = vmatprep.subr.mxu0 0.0
      %1730 = vmatpush1.msra.mxu0 %v995
      %1731 = vmatprep.subr.mxu0 0.0
      %1732 = vmatpush1.msra.mxu0 %v996
      %1733 = vmatprep.subr.mxu0 0.0
      %1734 = vmatpush1.msra.mxu0 %v997
      %1735 = vmatprep.subr.mxu0 0.0
      %1736 = vmatpush1.msra.mxu0 %v998
      %1737 = vmatprep.subr.mxu0 0.0
      %1738 = vmatpush1.msra.mxu0 %v999
      %1739 = vmatprep.subr.mxu0 0.0
      %1740 = vmatpush1.msra.mxu0 0.0
      %1741 = vmatprep.subr.mxu0 0.0
      %1742 = vmatpush1.msra.mxu0 0.0
      %1743 = vmatprep.subr.mxu0 0.0
      %1744 = vmatpush1.msra.mxu0 0.0
      %1745 = vmatprep.subr.mxu0 0.0
      %1746 = vmatpush1.msra.mxu0 0.0
      %1747 = vmatprep.subr.mxu0 0.0
      %1748 = vmatpush1.msra.mxu0 0.0
      %1749 = vmatprep.subr.mxu0 0.0
      %1750 = vmatpush1.msra.mxu0 0.0
      %1751 = vmatprep.subr.mxu0 0.0
      %1752 = vmatpush1.msra.mxu0 0.0
      %1753 = vmatprep.subr.mxu0 0.0
      %1754 = vmatpush1.msra.mxu0 0.0
      %1755 = vmatprep.subr.mxu0 0.0
      %1756 = vmatpush1.msra.mxu0 0.0
      %1757 = vmatprep.subr.mxu0 0.0
      %1758 = vmatpush1.msra.mxu0 0.0
      %1759 = vmatprep.subr.mxu0 0.0
      %1760 = vmatpush1.msra.mxu0 0.0
      %1761 = vmatprep.subr.mxu0 0.0
      %1762 = vmatpush1.msra.mxu0 0.0
      %1763 = vmatprep.subr.mxu0 0.0
      %1764 = vmatpush1.msra.mxu0 0.0
      %1765 = vmatprep.subr.mxu0 0.0
      %1766 = vmatpush1.msra.mxu0 0.0
      %1767 = vmatprep.subr.mxu0 0.0
      %1768 = vmatpush1.msra.mxu0 0.0
      %1769 = vmatprep.subr.mxu0 0.0
      %1770 = vmatpush1.msra.mxu0 0.0
      %1771 = vmatprep.mubr.f32.mxu0 0.0
      %1772 = vmatmul.mubr.f32.gmra.mrb[0].mxu0 %v1467
      %v1773 = vpop.f32.mrb[0].mxu0
      %v1774 = vadd.f32 0.0, %v1773
      %v1775 = vpop.f32.mrb[0].mxu0
      %1776 = vmatprep.mubr.f32.mxu0 0.0
      %1777 = vmatmul.mubr.f32.gmra.mrb[0].mxu0 %v1469
      %v1778 = vpop.f32.mrb[0].mxu0
      %v1779 = vadd.f32 0.0, %v1778
      %v1780 = vpop.f32.mrb[0].mxu0
      %1781 = vmatprep.mubr.f32.mxu0 0.0
      %1782 = vmatmul.mubr.f32.gmra.mrb[0].mxu0 %v1471
      %v1783 = vpop.f32.mrb[0].mxu0
      %v1784 = vadd.f32 0.0, %v1783
      %v1785 = vpop.f32.mrb[0].mxu0
      %1786 = vmatprep.mubr.f32.mxu0 0.0
      %1787 = vmatmul.mubr.f32.gmra.mrb[0].mxu0 %v1473
      %v1788 = vpop.f32.mrb[0].mxu0
      %v1789 = vadd.f32 0.0, %v1788
      %v1790 = vpop.f32.mrb[0].mxu0
      %1791 = vmatprep.mubr.f32.mxu0 0.0
      %1792 = vmatmul.mubr.f32.gmra.mrb[0].mxu0 %v1475
      %v1793 = vpop.f32.mrb[0].mxu0
      %v1794 = vadd.f32 0.0, %v1793
      %v1795 = vpop.f32.mrb[0].mxu0
      %1796 = vmatprep.mubr.f32.mxu0 0.0
      %1797 = vmatmul.mubr.f32.gmra.mrb[0].mxu0 %v1477
      %v1798 = vpop.f32.mrb[0].mxu0
      %v1799 = vadd.f32 0.0, %v1798
      %v1800 = vpop.f32.mrb[0].mxu0
      %1801 = vmatprep.mubr.f32.mxu0 0.0
      %1802 = vmatmul.mubr.f32.gmra.mrb[0].mxu0 %v1479
      %v1803 = vpop.f32.mrb[0].mxu0
      %v1804 = vadd.f32 0.0, %v1803
      %v1805 = vpop.f32.mrb[0].mxu0
      %1806 = vmatprep.mubr.f32.mxu0 0.0
      %1807 = vmatmul.mubr.f32.gmra.mrb[0].mxu0 %v1481
      %v1808 = vpop.f32.mrb[0].mxu0
      %v1809 = vadd.f32 0.0, %v1808
      %v1810 = vpop.f32.mrb[0].mxu0
      %1811 = vmatprep.mubr.f32.mxu0 0.0
      %1812 = vmatmul.mubr.f32.gmra.mrb[0].mxu0 %v1483
      %v1813 = vpop.f32.mrb[0].mxu0
      %v1814 = vadd.f32 0.0, %v1813
      %v1815 = vpop.f32.mrb[0].mxu0
      %1816 = vmatprep.mubr.f32.mxu0 0.0
      %1817 = vmatmul.mubr.f32.gmra.mrb[0].mxu0 %v1485
      %v1818 = vpop.f32.mrb[0].mxu0
      %v1819 = vadd.f32 0.0, %v1818
      %v1820 = vpop.f32.mrb[0].mxu0
      %1821 = vmatprep.mubr.f32.mxu0 0.0
      %1822 = vmatmul.mubr.f32.gmra.mrb[0].mxu0 %v1487
      %v1823 = vpop.f32.mrb[0].mxu0
      %v1824 = vadd.f32 0.0, %v1823
      %v1825 = vpop.f32.mrb[0].mxu0
      %1826 = vmatprep.mubr.f32.mxu0 0.0
      %1827 = vmatmul.mubr.f32.gmra.mrb[0].mxu0 %v1489
      %v1828 = vpop.f32.mrb[0].mxu0
      %v1829 = vadd.f32 0.0, %v1828
      %v1830 = vpop.f32.mrb[0].mxu0
      %1831 = vmatprep.mubr.f32.mxu0 0.0
      %1832 = vmatmul.mubr.f32.gmra.mrb[0].mxu0 %v1491
      %v1833 = vpop.f32.mrb[0].mxu0
      %v1834 = vadd.f32 0.0, %v1833
      %v1835 = vpop.f32.mrb[0].mxu0
      %1836 = vmatprep.mubr.f32.mxu0 0.0
      %1837 = vmatmul.mubr.f32.gmra.mrb[0].mxu0 %v1493
      %v1838 = vpop.f32.mrb[0].mxu0
      %v1839 = vadd.f32 0.0, %v1838
      %v1840 = vpop.f32.mrb[0].mxu0
      %1841 = vmatprep.mubr.f32.mxu0 0.0
      %1842 = vmatmul.mubr.f32.gmra.mrb[0].mxu0 %v1495
      %v1843 = vpop.f32.mrb[0].mxu0
      %v1844 = vadd.f32 0.0, %v1843
      %v1845 = vpop.f32.mrb[0].mxu0
      %1846 = vmatprep.mubr.f32.mxu0 0.0
      %1847 = vmatmul.mubr.f32.gmra.mrb[0].mxu0 %v1497
      %v1848 = vpop.f32.mrb[0].mxu0
      %v1849 = vadd.f32 0.0, %v1848
      %v1850 = vpop.f32.mrb[0].mxu0
      %1851 = vdwg.mxu0
      %v1852 = vadd.f32 %v1691, %v1774
      %v1853 = vadd.f32 %v1692, %v1779
      %v1854 = vadd.f32 %v1693, %v1784
      %v1855 = vadd.f32 %v1694, %v1789
      %v1856 = vadd.f32 %v1695, %v1794
      %v1857 = vadd.f32 %v1696, %v1799
      %v1858 = vadd.f32 %v1697, %v1804
      %v1859 = vadd.f32 %v1698, %v1809
      %v1860 = vadd.f32 %v1699, %v1814
      %v1861 = vadd.f32 %v1700, %v1819
      %v1862 = vadd.f32 %v1701, %v1824
      %v1863 = vadd.f32 %v1702, %v1829
      %v1864 = vadd.f32 %v1703, %v1834
      %v1865 = vadd.f32 %v1704, %v1839
      %v1866 = vadd.f32 %v1705, %v1844
      %v1867 = vadd.f32 %v1706, %v1849
      %1868 = vst.msk [vmem:[#allocation5] sm:$0xff] %vm1016, %v1852
      %1869 = vst.msk [vmem:[#allocation5 + $0x8] sm:$0xff] %vm1016, %v1853
      %1870 = vst.msk [vmem:[#allocation5 + $0x10] sm:$0xff] %vm1016, %v1854
      %1871 = vst.msk [vmem:[#allocation5 + $0x18] sm:$0xff] %vm1016, %v1855
      %1872 = vst.msk [vmem:[#allocation5 + $0x20] sm:$0xff] %vm1016, %v1856
      %1873 = vst.msk [vmem:[#allocation5 + $0x28] sm:$0xff] %vm1016, %v1857
      %1874 = vst.msk [vmem:[#allocation5 + $0x30] sm:$0xff] %vm1016, %v1858
      %1875 = vst.msk [vmem:[#allocation5 + $0x38] sm:$0xff] %vm1016, %v1859
      %1876 = vst.msk [vmem:[#allocation5 + $0x40] sm:$0xff] %vm1016, %v1860
      %1877 = vst.msk [vmem:[#allocation5 + $0x48] sm:$0xff] %vm1016, %v1861
      %1878 = vst.msk [vmem:[#allocation5 + $0x50] sm:$0xff] %vm1016, %v1862
      %1879 = vst.msk [vmem:[#allocation5 + $0x58] sm:$0xff] %vm1016, %v1863
      %1880 = vst.msk [vmem:[#allocation5 + $0x60] sm:$0xff] %vm1016, %v1864
      %1881 = vst.msk [vmem:[#allocation5 + $0x68] sm:$0xff] %vm1016, %v1865
      %1882 = vst.msk [vmem:[#allocation5 + $0x70] sm:$0xff] %vm1016, %v1866
      %1883 = vst.msk [vmem:[#allocation5 + $0x78] sm:$0xff] %vm1016, %v1867
      %1884 = vst.msk [vmem:[#allocation3] sm:$0xff] %vm1578, %v1306
      %1885 = vst.msk [vmem:[#allocation3 + $0x8] sm:$0xff] %vm1578, %v1307
      %1886 = vst.msk [vmem:[#allocation3 + $0x10] sm:$0xff] %vm1578, %v1308
      %1887 = vst.msk [vmem:[#allocation3 + $0x18] sm:$0xff] %vm1578, %v1309
      %1888 = vst.msk [vmem:[#allocation3 + $0x20] sm:$0xff] %vm1578, %v1310
      %1889 = vst.msk [vmem:[#allocation3 + $0x28] sm:$0xff] %vm1578, %v1311
      %1890 = vst.msk [vmem:[#allocation3 + $0x30] sm:$0xff] %vm1578, %v1312
      %1891 = vst.msk [vmem:[#allocation3 + $0x38] sm:$0xff] %vm1578, %v1313
      %1892 = vst.msk [vmem:[#allocation3 + $0x40] sm:$0xff] %vm1578, %v1314
      %1893 = vst.msk [vmem:[#allocation3 + $0x48] sm:$0xff] %vm1578, %v1315
      %1894 = vst.msk [vmem:[#allocation3 + $0x50] sm:$0xff] %vm1578, %v1316
      %1895 = vst.msk [vmem:[#allocation3 + $0x58] sm:$0xff] %vm1578, %v1317
      %1896 = vst.msk [vmem:[#allocation3 + $0x60] sm:$0xff] %vm1578, %v1318
      %1897 = vst.msk [vmem:[#allocation3 + $0x68] sm:$0xff] %vm1578, %v1319
      %1898 = vst.msk [vmem:[#allocation3 + $0x70] sm:$0xff] %vm1578, %v1320
      %1899 = vst.msk [vmem:[#allocation3 + $0x78] sm:$0xff] %vm1578, %v1321
      // Predicated region
      $region53: #{tpu_custom_call.1} parent=43 // pred_check
        %p1900 = pneg %p335
      $region54: #{tpu_custom_call.1} parent=43 // pred_check_branch
        %1902 = sbr.rel (%p1900) target = $region56
      $region55: #{tpu_custom_call.1} parent=43 // pred_region
        %v1903 = vld [vmem:[#allocation5] sm:$0xff]
        %v1904 = vld [vmem:[#allocation5 + $0x8] sm:$0xff]
        %v1905 = vld [vmem:[#allocation5 + $0x10] sm:$0xff]
        %v1906 = vld [vmem:[#allocation5 + $0x18] sm:$0xff]
        %v1907 = vld [vmem:[#allocation5 + $0x20] sm:$0xff]
        %v1908 = vld [vmem:[#allocation5 + $0x28] sm:$0xff]
        %v1909 = vld [vmem:[#allocation5 + $0x30] sm:$0xff]
        %v1910 = vld [vmem:[#allocation5 + $0x38] sm:$0xff]
        %v1911 = vld [vmem:[#allocation5 + $0x40] sm:$0xff]
        %v1912 = vld [vmem:[#allocation5 + $0x48] sm:$0xff]
        %v1913 = vld [vmem:[#allocation5 + $0x50] sm:$0xff]
        %v1914 = vld [vmem:[#allocation5 + $0x58] sm:$0xff]
        %v1915 = vld [vmem:[#allocation5 + $0x60] sm:$0xff]
        %v1916 = vld [vmem:[#allocation5 + $0x68] sm:$0xff]
        %v1917 = vld [vmem:[#allocation5 + $0x70] sm:$0xff]
        %v1918 = vld [vmem:[#allocation5 + $0x78] sm:$0xff]
        %v1919 = vld [vmem:[#allocation4] sm:$0xff]
        %v1920 = vld [vmem:[#allocation4 + $0x8] sm:$0xff]
        %v1921 = vld [vmem:[#allocation4 + $0x10] sm:$0xff]
        %v1922 = vld [vmem:[#allocation4 + $0x18] sm:$0xff]
        %v1923 = vld [vmem:[#allocation4 + $0x20] sm:$0xff]
        %v1924 = vld [vmem:[#allocation4 + $0x28] sm:$0xff]
        %v1925 = vld [vmem:[#allocation4 + $0x30] sm:$0xff]
        %v1926 = vld [vmem:[#allocation4 + $0x38] sm:$0xff]
        %v1927 = vld [vmem:[#allocation4 + $0x40] sm:$0xff]
        %v1928 = vld [vmem:[#allocation4 + $0x48] sm:$0xff]
        %v1929 = vld [vmem:[#allocation4 + $0x50] sm:$0xff]
        %v1930 = vld [vmem:[#allocation4 + $0x58] sm:$0xff]
        %v1931 = vld [vmem:[#allocation4 + $0x60] sm:$0xff]
        %v1932 = vld [vmem:[#allocation4 + $0x68] sm:$0xff]
        %v1933 = vld [vmem:[#allocation4 + $0x70] sm:$0xff]
        %v1934 = vld [vmem:[#allocation4 + $0x78] sm:$0xff]
        %1936 = vset.pattern.permute.xlu0 0
        %1937 = vperm.xlu0 %1936, %v1919
        %v1938 = vpop.permute.xlu0 %1937
        %1941 = vset.pattern.permute.xlu0 0
        %1942 = vperm.xlu0 %1941, %v1920
        %v1943 = vpop.permute.xlu0 %1942
        %1946 = vset.pattern.permute.xlu0 0
        %1947 = vperm.xlu0 %1946, %v1921
        %v1948 = vpop.permute.xlu0 %1947
        %1951 = vset.pattern.permute.xlu0 0
        %1952 = vperm.xlu0 %1951, %v1922
        %v1953 = vpop.permute.xlu0 %1952
        %1956 = vset.pattern.permute.xlu0 0
        %1957 = vperm.xlu0 %1956, %v1923
        %v1958 = vpop.permute.xlu0 %1957
        %1961 = vset.pattern.permute.xlu0 0
        %1962 = vperm.xlu0 %1961, %v1924
        %v1963 = vpop.permute.xlu0 %1962
        %1966 = vset.pattern.permute.xlu0 0
        %1967 = vperm.xlu0 %1966, %v1925
        %v1968 = vpop.permute.xlu0 %1967
        %1971 = vset.pattern.permute.xlu0 0
        %1972 = vperm.xlu0 %1971, %v1926
        %v1973 = vpop.permute.xlu0 %1972
        %1976 = vset.pattern.permute.xlu0 0
        %1977 = vperm.xlu0 %1976, %v1927
        %v1978 = vpop.permute.xlu0 %1977
        %1981 = vset.pattern.permute.xlu0 0
        %1982 = vperm.xlu0 %1981, %v1928
        %v1983 = vpop.permute.xlu0 %1982
        %1986 = vset.pattern.permute.xlu0 0
        %1987 = vperm.xlu0 %1986, %v1929
        %v1988 = vpop.permute.xlu0 %1987
        %1991 = vset.pattern.permute.xlu0 0
        %1992 = vperm.xlu0 %1991, %v1930
        %v1993 = vpop.permute.xlu0 %1992
        %1996 = vset.pattern.permute.xlu0 0
        %1997 = vperm.xlu0 %1996, %v1931
        %v1998 = vpop.permute.xlu0 %1997
        %2001 = vset.pattern.permute.xlu0 0
        %2002 = vperm.xlu0 %2001, %v1932
        %v2003 = vpop.permute.xlu0 %2002
        %2006 = vset.pattern.permute.xlu0 0
        %2007 = vperm.xlu0 %2006, %v1933
        %v2008 = vpop.permute.xlu0 %2007
        %2011 = vset.pattern.permute.xlu0 0
        %2012 = vperm.xlu0 %2011, %v1934
        %v2013 = vpop.permute.xlu0 %2012
        %v2015 = vrcp.pop %v1938
        %v2016 = vmul.f32 %v1903, %v2015
        %v2017 = vrcp.pop %v1943
        %v2018 = vmul.f32 %v1904, %v2017
        %v2019 = vrcp.pop %v1948
        %v2020 = vmul.f32 %v1905, %v2019
        %v2021 = vrcp.pop %v1953
        %v2022 = vmul.f32 %v1906, %v2021
        %v2023 = vrcp.pop %v1958
        %v2024 = vmul.f32 %v1907, %v2023
        %v2025 = vrcp.pop %v1963
        %v2026 = vmul.f32 %v1908, %v2025
        %v2027 = vrcp.pop %v1968
        %v2028 = vmul.f32 %v1909, %v2027
        %v2029 = vrcp.pop %v1973
        %v2030 = vmul.f32 %v1910, %v2029
        %v2031 = vrcp.pop %v1978
        %v2032 = vmul.f32 %v1911, %v2031
        %v2033 = vrcp.pop %v1983
        %v2034 = vmul.f32 %v1912, %v2033
        %v2035 = vrcp.pop %v1988
        %v2036 = vmul.f32 %v1913, %v2035
        %v2037 = vrcp.pop %v1993
        %v2038 = vmul.f32 %v1914, %v2037
        %v2039 = vrcp.pop %v1998
        %v2040 = vmul.f32 %v1915, %v2039
        %v2041 = vrcp.pop %v2003
        %v2042 = vmul.f32 %v1916, %v2041
        %v2043 = vrcp.pop %v2008
        %v2044 = vmul.f32 %v1917, %v2043
        %v2045 = vrcp.pop %v2013
        %v2046 = vmul.f32 %v1918, %v2045
        %2047 = vst.msk [vmem:[%s332] sm:$0xff] %vm1016, %v2016
        %2048 = vst.msk [vmem:[%s332 + $0x8] sm:$0xff] %vm1016, %v2018
        %2049 = vst.msk [vmem:[%s332 + $0x10] sm:$0xff] %vm1016, %v2020
        %2050 = vst.msk [vmem:[%s332 + $0x18] sm:$0xff] %vm1016, %v2022
        %2051 = vst.msk [vmem:[%s332 + $0x20] sm:$0xff] %vm1016, %v2024
        %2052 = vst.msk [vmem:[%s332 + $0x28] sm:$0xff] %vm1016, %v2026
        %2053 = vst.msk [vmem:[%s332 + $0x30] sm:$0xff] %vm1016, %v2028
        %2054 = vst.msk [vmem:[%s332 + $0x38] sm:$0xff] %vm1016, %v2030
        %2055 = vst.msk [vmem:[%s332 + $0x40] sm:$0xff] %vm1016, %v2032
        %2056 = vst.msk [vmem:[%s332 + $0x48] sm:$0xff] %vm1016, %v2034
        %2057 = vst.msk [vmem:[%s332 + $0x50] sm:$0xff] %vm1016, %v2036
        %2058 = vst.msk [vmem:[%s332 + $0x58] sm:$0xff] %vm1016, %v2038
        %2059 = vst.msk [vmem:[%s332 + $0x60] sm:$0xff] %vm1016, %v2040
        %2060 = vst.msk [vmem:[%s332 + $0x68] sm:$0xff] %vm1016, %v2042
        %2061 = vst.msk [vmem:[%s332 + $0x70] sm:$0xff] %vm1016, %v2044
        %2062 = vst.msk [vmem:[%s332 + $0x78] sm:$0xff] %vm1016, %v2046
      $region56: #{tpu_custom_call.1} parent=43 // pred_fallthru
        _
      %s2063 = smul.u32 16, %s23
      %p2064 = scmp.lt.s32.totalorder %s22, 1
      %s2065 = scalar_select %p2064, %s22, 1
      %p2066 = scmp.lt.s32.totalorder %s2063, 15
      %s2067 = scalar_select %p2066, %s2063, 15
      %s2068 = smul.addr %s2065, 16
      %s2069 = sadd.s32 %s2067, %s2068
      %s2070 = smul.addr %s2069, 8
      %s2071 = scalar_lea.vmem %s6, %s2070
      // Predicated region
      $region57: #{tpu_custom_call.1} parent=43 // pred_check
        %p2072 = pneg %p196
      $region58: #{tpu_custom_call.1} parent=43 // pred_check_branch
        %2074 = sbr.rel (%p2072) target = $region60
      $region59: #{tpu_custom_call.1} parent=43 // pred_region
        %s2075 = smul.u32 16, %s23
      $region60: #{tpu_custom_call.1} parent=43 // pred_fallthru
        _
    $region44: #{tpu_custom_call.1} parent=5 // pred_fallthru
      _
    %p2076 = scmp.le.s32.totalorder 2, %s12
    // Predicated region
    $region61: #{tpu_custom_call.1} parent=5 // pred_check
      %p2077 = pneg %p2076
    $region62: #{tpu_custom_call.1} parent=5 // pred_check_branch
      %2079 = sbr.rel (%p2077) target = $region64
    $region63: #{tpu_custom_call.1} parent=5 // pred_region
      %s2080 = ssub.s32 %s12, 2
      // Predicated region
      $region65: #{tpu_custom_call.1} parent=63 // pred_check
        %p2081 = pneg %p202
      $region66: #{tpu_custom_call.1} parent=63 // pred_check_branch
        %2083 = sbr.rel (%p2081) target = $region68
      $region67: #{tpu_custom_call.1} parent=63 // pred_region
        %s2084 = smul.u32 16, %s26
        %p2085 = scmp.lt.s32.totalorder %s25, 1
        %s2086 = scalar_select %p2085, %s25, 1
        %p2087 = scmp.lt.s32.totalorder %s2084, 15
        %s2088 = scalar_select %p2087, %s2084, 15
        %s2089 = smul.addr %s2086, 16
        %s2090 = sadd.s32 %s2088, %s2089
        %s2091 = smul.addr %s2090, 8
        %s2092 = scalar_lea.vmem %s6, %s2091
      $region68: #{tpu_custom_call.1} parent=63 // pred_fallthru
        _
    $region64: #{tpu_custom_call.1} parent=5 // pred_fallthru
      _
  $region6: #{tpu_custom_call.1} parent=0 // loop_footer
    %s16 = sadd.s32 1, %s12
  $region7: #{tpu_custom_call.1} parent=0 // loop_footer_branch
    %11 = sbr.rel target = $region3
  $region8: #{tpu_custom_call.1} parent=0 // loop_exit
    _

</llo_original>
